<compile_context>
chip_gen: v7x
topology: tpu7x:2x2x1
jax: 0.10.0
libtpu: 0.0.40
codegen_flags: <defaults>
</compile_context>

<pallas_src>
import functools
import math

import numpy as np
import jax
import jax.numpy as jnp
from jax import lax
from jax.experimental import pallas as pl
from jax.experimental.pallas import tpu as pltpu

_INV_SQRT2 = 0.7071067811865476


def _erf_approx(x):
    """Abramowitz & Stegun 7.1.26 erf (|err| < 1.5e-7).

    Uses only exp / mul / add / where so it lowers cleanly in Mosaic and the
    transcendental rides the EUP slot.
    """
    a1, a2, a3, a4, a5 = (0.254829592, -0.284496736, 1.421413741,
                          -1.453152027, 1.061405429)
    p = 0.3275911
    ax = jnp.abs(x)
    t = 1.0 / (1.0 + p * ax)
    poly = ((((a5 * t + a4) * t + a3) * t + a2) * t + a1) * t
    y = 1.0 - poly * jnp.exp(-ax * ax)
    return jnp.where(x < 0.0, -y, y)


def _gelu_exact(x):
    return 0.5 * x * (1.0 + _erf_approx(x * _INV_SQRT2))


def _shift_rows(v, s):
    """w[i] = v[i+s] for in-range rows; zero fill elsewhere (callers mask)."""
    if s == 0:
        return v
    zeros = jnp.zeros((abs(s), v.shape[1]), v.dtype)
    if s > 0:
        return jnp.concatenate([v[s:], zeros], axis=0)
    return jnp.concatenate([zeros, v[:s]], axis=0)


def _make_masks(bt, P, W, H):
    """(bt*P, 16) f32: cols 0..8 = 3x3 tap validity, col 9 = cls-row flag."""
    q = np.arange(bt * P)
    r = q % P
    p = r - 1
    w = p // H
    h = p % H
    patch = r >= 1
    m = np.zeros((bt * P, 16), np.float32)
    for kh in range(3):
        for kw in range(3):
            a, b = kh - 1, kw - 1
            valid = patch & (w + a >= 0) & (w + a < W) & (h + b >= 0) & (h + b < H)
            m[:, kh * 3 + kw] = valid.astype(np.float32)
    m[:, 9] = (~patch).astype(np.float32)
    return jnp.asarray(m)


def _pick_batch_tile(B, P):
    """Largest divisor of B with bt*P <= 1024 rows, keeping >=2 grid steps."""
    best = 1
    for bt in range(1, B + 1):
        if B % bt:
            continue
        if bt * P > 1024:
            break
        if B // bt >= 2 or B == 1:
            best = bt
    return best


# ---------------------------------------------------------------------------
# Fused kernel: fc1+GELU -> 1x1 branches -> 3x3 conv -> residual -> fc2
# ---------------------------------------------------------------------------

def _make_kernel(bt, P, W, H, fc_in, D, ch1x1, C, ch3x3, skip_connect):
    M = bt * P

    def kernel(x_ref, masks_ref, w1_ref, b1_ref, wb_ref, sb_ref,
               w3_ref, s3_ref, w2_ref, b2_ref, o_ref):
        x = x_ref[...].reshape(M, fc_in)                       # f32, free reshape

        # --- D_fc1 + exact GELU -------------------------------------------
        x0 = jnp.dot(x.astype(jnp.bfloat16), w1_ref[...],
                     preferred_element_type=jnp.float32) + b1_ref[...]
        x0 = _gelu_exact(x0)                                   # (M, D) f32
        x0_b = x0.astype(jnp.bfloat16)

        # --- fused 1x1 branches (branch1 + branch2-reduce), BN folded ------
        y = jnp.dot(x0_b, wb_ref[...], preferred_element_type=jnp.float32)
        y = jnp.maximum(y + sb_ref[...], 0.0)                  # (M, ch1x1 + C)
        br1 = y[:, :ch1x1]                                     # (M, ch1x1) f32
        z = y[:, ch1x1:].astype(jnp.bfloat16)                  # (M, C) bf16

        # --- 3x3 conv: 9 accumulating dots over shifted + masked views -----
        # Row q of image i maps to spatial (w, h) = divmod((q mod P) - 1, H);
        # tap (kh, kw) reads row q + (kh-1)*H + (kw-1); the precomputed mask
        # zeroes taps that fall outside the image (SAME padding) so the
        # zero-fill shift and cross-image wrap can never leak data.
        acc = jnp.zeros((M, ch3x3), jnp.float32)
        for kh in range(3):
            for kw in range(3):
                t = kh * 3 + kw
                s = (kh - 1) * H + (kw - 1)
                mask_t = masks_ref[:, t:t + 1].astype(jnp.bfloat16)   # (M, 1)
                zt = _shift_rows(z, s) * mask_t
                acc = acc + jnp.dot(zt, w3_ref[t],
                                    preferred_element_type=jnp.float32)
        br2 = jnp.maximum(acc + s3_ref[...], 0.0)              # (M, ch3x3) f32

        # --- residual/cls combine + single D_fc2 dot ------------------------
        # full[cls] == x0[cls]  =>  T = 2*x0 on cls rows, x0 + [br1|br2] else.
        cls = masks_ref[:, 9:10]                               # (M, 1) f32
        tok = jnp.concatenate([br1, br2], axis=-1)             # (M, D) f32
        T = x0 + cls * x0 + (1.0 - cls) * tok                  # (M, D) f32
        out = jnp.dot(T.astype(jnp.bfloat16), w2_ref[...],
                      preferred_element_type=jnp.float32) + b2_ref[...]
        if skip_connect:
            out = out + x
        o_ref[...] = out.reshape(bt, P, fc_in).astype(o_ref.dtype)

    return kernel


# ---------------------------------------------------------------------------
# Wrapper
# ---------------------------------------------------------------------------

def conv_adapter3_forward(x, p, *, skip_connect=False, batch_tile=None):
    B, P, fc_in = x.shape
    W = H = int(round(math.sqrt(P - 1)))
    assert W * H == P - 1, "ConvAdapter3 requires a square patch-token grid"
    D = p["fc1_w"].shape[1]
    ch1x1 = p["b1_w"].shape[1]
    C = p["b2a_w"].shape[1]            # ch3x3red
    ch3x3 = p["b2b_w"].shape[-1]
    assert ch1x1 + ch3x3 == D, "ConvAdapter3 needs ch1x1 + ch3x3 == in_channels"

    bt = batch_tile if batch_tile is not None else _pick_batch_tile(B, P)
    assert B % bt == 0
    M = bt * P

    # Weight prep (tiny, once per call under jit): fuse 1x1 branches, split the
    # 3x3 weight per tap, bf16 MXU operands, f32 bias/shift rows.
    w1 = p["fc1_w"].astype(jnp.bfloat16)
    b1 = p["fc1_b"].reshape(1, -1).astype(jnp.float32)
    wb = jnp.concatenate([p["b1_w"], p["b2a_w"]], axis=1).astype(jnp.bfloat16)
    sb = jnp.concatenate([p["b1_shift"], p["b2a_shift"]]).reshape(1, -1).astype(jnp.float32)
    w3 = p["b2b_w"].reshape(9, C, ch3x3).astype(jnp.bfloat16)
    s3 = p["b2b_shift"].reshape(1, -1).astype(jnp.float32)
    w2 = p["fc2_w"].astype(jnp.bfloat16)
    b2 = p["fc2_b"].reshape(1, -1).astype(jnp.float32)

    masks = _make_masks(bt, P, W, H)                           # (M, 16) f32

    kernel = _make_kernel(bt, P, W, H, fc_in, D, ch1x1, C, ch3x3, skip_connect)

    in_specs = [
        pl.BlockSpec((bt, P, fc_in), lambda i: (i, 0, 0)),     # x
        pl.BlockSpec((M, 16), lambda i: (0, 0)),               # masks
        pl.BlockSpec((fc_in, D), lambda i: (0, 0)),            # W1
        pl.BlockSpec((1, D), lambda i: (0, 0)),                # b1
        pl.BlockSpec((D, ch1x1 + C), lambda i: (0, 0)),        # fused 1x1 W
        pl.BlockSpec((1, ch1x1 + C), lambda i: (0, 0)),        # fused 1x1 shift
        pl.BlockSpec((9, C, ch3x3), lambda i: (0, 0, 0)),      # 3x3 taps
        pl.BlockSpec((1, ch3x3), lambda i: (0, 0)),            # 3x3 shift
        pl.BlockSpec((D, fc_in), lambda i: (0, 0)),            # W2
        pl.BlockSpec((1, fc_in), lambda i: (0, 0)),            # b2
    ]
    out_specs = pl.BlockSpec((bt, P, fc_in), lambda i: (i, 0, 0))

    flops = int(2 * B * P * (fc_in * D + D * (ch1x1 + C) + 9 * C * ch3x3 + D * fc_in))
    bytes_acc = int(2 * B * P * fc_in * 4
                    + 2 * (fc_in * D + D * (ch1x1 + C) + 9 * C * ch3x3 + D * fc_in))

    return pl.pallas_call(
        kernel,
        out_shape=jax.ShapeDtypeStruct((B, P, fc_in), jnp.float32),
        grid=(B // bt,),
        in_specs=in_specs,
        out_specs=out_specs,
        compiler_params=pltpu.CompilerParams(
            dimension_semantics=("parallel",)),
        cost_estimate=pl.CostEstimate(flops=flops, transcendentals=int(B * P * D),
                                      bytes_accessed=bytes_acc),
    )(x, masks, w1, b1, wb, sb, w3, s3, w2, b2)


# ---------------------------------------------------------------------------
# Deterministic parameter init + BN folding (eval-mode running stats)
# ---------------------------------------------------------------------------

def init_params(key, fc_in, in_ch, ch1x1, ch3x3red, ch3x3, eps=1e-3):
    ks = iter(jax.random.split(key, 32))

    def nrm(shape, s=0.2):
        return jax.random.normal(next(ks), shape, jnp.float32) * s

    def pos(shape):
        return jax.random.uniform(next(ks), shape, jnp.float32, minval=0.5, maxval=1.5)

    raw = {
        "fc1_w": nrm((fc_in, in_ch)), "fc1_b": nrm((in_ch,)),
        "fc2_w": nrm((in_ch, fc_in)), "fc2_b": nrm((fc_in,)),
        "b1_w": nrm((in_ch, ch1x1)), "b1_cb": nrm((ch1x1,)),
        "b1_bn": (pos((ch1x1,)), nrm((ch1x1,)), nrm((ch1x1,)), pos((ch1x1,))),
        "b2a_w": nrm((in_ch, ch3x3red)), "b2a_cb": nrm((ch3x3red,)),
        "b2a_bn": (pos((ch3x3red,)), nrm((ch3x3red,)), nrm((ch3x3red,)), pos((ch3x3red,))),
        "b2b_w": nrm((3, 3, ch3x3red, ch3x3)), "b2b_cb": nrm((ch3x3,)),
        "b2b_bn": (pos((ch3x3,)), nrm((ch3x3,)), nrm((ch3x3,)), pos((ch3x3,))),
    }

    def fold(w, cb, bn):
        g, bt_, mn, vr = bn
        scale = g / jnp.sqrt(vr + eps)
        return w * scale, (cb - mn) * scale + bt_

    b1_w, b1_s = fold(raw["b1_w"], raw["b1_cb"], raw["b1_bn"])
    b2a_w, b2a_s = fold(raw["b2a_w"], raw["b2a_cb"], raw["b2a_bn"])
    b2b_w, b2b_s = fold(raw["b2b_w"], raw["b2b_cb"], raw["b2b_bn"])

    folded = {
        "fc1_w": raw["fc1_w"], "fc1_b": raw["fc1_b"],
        "fc2_w": raw["fc2_w"], "fc2_b": raw["fc2_b"],
        "b1_w": b1_w, "b1_shift": b1_s,
        "b2a_w": b2a_w, "b2a_shift": b2a_s,
        "b2b_w": b2b_w, "b2b_shift": b2b_s,
    }
    return raw, folded


# ---------------------------------------------------------------------------
# Pure-JAX reference (mirrors the PyTorch forward, eval-mode BN)
# ---------------------------------------------------------------------------

def reference_forward(x, raw, eps=1e-3, skip_connect=False):
    B, P, _ = x.shape
    W = H = int(round(math.sqrt(P - 1)))
    x0 = jax.nn.gelu(x @ raw["fc1_w"] + raw["fc1_b"], approximate=False)
    xs = x0[:, 1:, :].reshape(B, W, H, -1)

    def bn_relu(y, g, bt, mn, vr):
        return jax.nn.relu((y - mn) / jnp.sqrt(vr + eps) * g + bt)

    br1 = bn_relu(jnp.einsum("bhwc,cd->bhwd", xs, raw["b1_w"]) + raw["b1_cb"], *raw["b1_bn"])
    b2r = bn_relu(jnp.einsum("bhwc,cd->bhwd", xs, raw["b2a_w"]) + raw["b2a_cb"], *raw["b2a_bn"])
    conv = lax.conv_general_dilated(b2r, raw["b2b_w"], (1, 1), "SAME",
                                    dimension_numbers=("NHWC", "HWIO", "NHWC"))
    br2 = bn_relu(conv + raw["b2b_cb"], *raw["b2b_bn"])
    tokens = jnp.concatenate([br1, br2], axis=-1).reshape(B, W * H, -1)
    full = jnp.concatenate([x0[:, 0:1, :], tokens], axis=1)
    out = (full + x0) @ raw["fc2_w"] + raw["fc2_b"]
    if skip_connect:
        out = out + x
    return out


# ---------------------------------------------------------------------------

if __name__ == "__main__":
    # ch1x1 + ch3x3 must equal in_channels (implied by the PyTorch reshape).
    fc_in_channels, in_channels = 32, 16
    ch1x1, ch3x3red, ch3x3 = 8, 4, 8
    B, Wg = 2, 4
    P = Wg * Wg + 1  # 1 cls token + 4x4 patch tokens

    key = jax.random.PRNGKey(0)
    kx, kp = jax.random.split(key)
    x = jax.random.normal(kx, (B, P, fc_in_channels), jnp.float32)
    raw, folded = init_params(kp, fc_in_channels, in_channels, ch1x1, ch3x3red, ch3x3)

    for skip in (False, True):
        fwd = jax.jit(functools.partial(conv_adapter3_forward, skip_connect=skip))
        out = jax.block_until_ready(fwd(x, folded))
        ref = reference_forward(x, raw, skip_connect=skip)
        assert out.shape == (B, P, fc_in_channels), out.shape
        err = float(jnp.max(jnp.abs(out - ref)))
        # bf16 MXU operands with f32 accumulation / f32 epilogues.
        assert err < 5e-2, f"skip_connect={skip}: max abs error vs reference {err}"

    print("KERNEL_OK")
</pallas_src>

<mosaic_0001>
module attributes {stable_mosaic.version = 11 : i64} {
  func.func @kernel(%arg0: i32, %arg1: memref<1x17x32xf32, #tpu.memory_space<vmem>>, %arg2: memref<17x16xf32, #tpu.memory_space<vmem>>, %arg3: memref<32x16xbf16, #tpu.memory_space<vmem>>, %arg4: memref<1x16xf32, #tpu.memory_space<vmem>>, %arg5: memref<16x12xbf16, #tpu.memory_space<vmem>>, %arg6: memref<1x12xf32, #tpu.memory_space<vmem>>, %arg7: memref<9x4x8xbf16, #tpu.memory_space<vmem>>, %arg8: memref<1x8xf32, #tpu.memory_space<vmem>>, %arg9: memref<16x32xbf16, #tpu.memory_space<vmem>>, %arg10: memref<1x32xf32, #tpu.memory_space<vmem>>, %arg11: memref<1x17x32xf32, #tpu.memory_space<vmem>>) attributes {dimension_semantics = [#tpu.dimension_semantics<parallel>], iteration_bounds = array<i64: 2>, scalar_prefetch = 0 : i64, scratch_operands = 0 : i64, tpu.core_type = #tpu.core_type<tc>, window_params = [{transform_indices = @transform_0, window_bounds = array<i64: 1, 17, 32>}, {pipeline_mode = #tpu.pipeline_mode<synchronous>, transform_indices = @transform_1, window_bounds = array<i64: 17, 16>}, {pipeline_mode = #tpu.pipeline_mode<synchronous>, transform_indices = @transform_2, window_bounds = array<i64: 32, 16>}, {pipeline_mode = #tpu.pipeline_mode<synchronous>, transform_indices = @transform_3, window_bounds = array<i64: 1, 16>}, {pipeline_mode = #tpu.pipeline_mode<synchronous>, transform_indices = @transform_4, window_bounds = array<i64: 16, 12>}, {pipeline_mode = #tpu.pipeline_mode<synchronous>, transform_indices = @transform_5, window_bounds = array<i64: 1, 12>}, {pipeline_mode = #tpu.pipeline_mode<synchronous>, transform_indices = @transform_6, window_bounds = array<i64: 9, 4, 8>}, {pipeline_mode = #tpu.pipeline_mode<synchronous>, transform_indices = @transform_7, window_bounds = array<i64: 1, 8>}, {pipeline_mode = #tpu.pipeline_mode<synchronous>, transform_indices = @transform_8, window_bounds = array<i64: 16, 32>}, {pipeline_mode = #tpu.pipeline_mode<synchronous>, transform_indices = @transform_9, window_bounds = array<i64: 1, 32>}, {transform_indices = @transform_10, window_bounds = array<i64: 1, 17, 32>}]} {
    %c0 = arith.constant 0 : index
    %c0_0 = arith.constant 0 : index
    %c0_1 = arith.constant 0 : index
    %0 = vector.load %arg1[%c0, %c0_0, %c0_1] : memref<1x17x32xf32, #tpu.memory_space<vmem>>, vector<1x17x32xf32>
    %1 = vector.shape_cast %0 : vector<1x17x32xf32> to vector<17x32xf32>
    %2 = arith.truncf %1 : vector<17x32xf32> to vector<17x32xbf16>
    %c0_2 = arith.constant 0 : index
    %c0_3 = arith.constant 0 : index
    %3 = vector.load %arg3[%c0_2, %c0_3] : memref<32x16xbf16, #tpu.memory_space<vmem>>, vector<32x16xbf16>
    %cst = arith.constant dense<0.000000e+00> : vector<17x16xf32>
    %4 = tpu.matmul %2, %3, %cst {dimension_numbers = #tpu.dot_dimension_numbers<[1], [0], [0], [1], [0, 0, 1, 1], [], []>} : vector<17x32xbf16>, vector<32x16xbf16>, vector<17x16xf32> -> vector<17x16xf32>
    %c0_4 = arith.constant 0 : index
    %c0_5 = arith.constant 0 : index
    %5 = vector.load %arg4[%c0_4, %c0_5] : memref<1x16xf32, #tpu.memory_space<vmem>>, vector<1x16xf32>
    %6 = vector.broadcast %5 : vector<1x16xf32> to vector<17x16xf32>
    %7 = arith.addf %4, %6 : vector<17x16xf32>
    %cst_6 = arith.constant 5.000000e-01 : f32
    %8 = vector.broadcast %cst_6 : f32 to vector<17x16xf32>
    %9 = arith.mulf %8, %7 : vector<17x16xf32>
    %cst_7 = arith.constant 0.707106769 : f32
    %10 = vector.broadcast %cst_7 : f32 to vector<17x16xf32>
    %11 = arith.mulf %7, %10 : vector<17x16xf32>
    %12 = math.absf %11 : vector<17x16xf32>
    %cst_8 = arith.constant 0.327591091 : f32
    %13 = vector.broadcast %cst_8 : f32 to vector<17x16xf32>
    %14 = arith.mulf %13, %12 : vector<17x16xf32>
    %cst_9 = arith.constant 1.000000e+00 : f32
    %15 = vector.broadcast %cst_9 : f32 to vector<17x16xf32>
    %16 = arith.addf %15, %14 : vector<17x16xf32>
    %cst_10 = arith.constant 1.000000e+00 : f32
    %17 = vector.broadcast %cst_10 : f32 to vector<17x16xf32>
    %18 = arith.divf %17, %16 : vector<17x16xf32>
    %cst_11 = arith.constant 1.06140542 : f32
    %19 = vector.broadcast %cst_11 : f32 to vector<17x16xf32>
    %20 = arith.mulf %19, %18 : vector<17x16xf32>
    %cst_12 = arith.constant -1.45315206 : f32
    %21 = vector.broadcast %cst_12 : f32 to vector<17x16xf32>
    %22 = arith.addf %20, %21 : vector<17x16xf32>
    %23 = arith.mulf %22, %18 : vector<17x16xf32>
    %cst_13 = arith.constant 1.42141378 : f32
    %24 = vector.broadcast %cst_13 : f32 to vector<17x16xf32>
    %25 = arith.addf %23, %24 : vector<17x16xf32>
    %26 = arith.mulf %25, %18 : vector<17x16xf32>
    %cst_14 = arith.constant -0.284496725 : f32
    %27 = vector.broadcast %cst_14 : f32 to vector<17x16xf32>
    %28 = arith.addf %26, %27 : vector<17x16xf32>
    %29 = arith.mulf %28, %18 : vector<17x16xf32>
    %cst_15 = arith.constant 0.254829586 : f32
    %30 = vector.broadcast %cst_15 : f32 to vector<17x16xf32>
    %31 = arith.addf %29, %30 : vector<17x16xf32>
    %32 = arith.mulf %31, %18 : vector<17x16xf32>
    %cst_16 = arith.constant 0.000000e+00 : f32
    %33 = vector.broadcast %cst_16 : f32 to vector<17x16xf32>
    %34 = arith.subf %33, %12 : vector<17x16xf32>
    %35 = arith.mulf %34, %12 : vector<17x16xf32>
    %36 = math.exp %35 : vector<17x16xf32>
    %37 = arith.mulf %32, %36 : vector<17x16xf32>
    %cst_17 = arith.constant 1.000000e+00 : f32
    %38 = vector.broadcast %cst_17 : f32 to vector<17x16xf32>
    %39 = arith.subf %38, %37 : vector<17x16xf32>
    %cst_18 = arith.constant 0.000000e+00 : f32
    %40 = vector.broadcast %cst_18 : f32 to vector<17x16xf32>
    %41 = arith.cmpf olt, %11, %40 : vector<17x16xf32>
    %cst_19 = arith.constant 0.000000e+00 : f32
    %42 = vector.broadcast %cst_19 : f32 to vector<17x16xf32>
    %43 = arith.subf %42, %39 : vector<17x16xf32>
    %44 = arith.select %41, %43, %39 : vector<17x16xi1>, vector<17x16xf32>
    %cst_20 = arith.constant 1.000000e+00 : f32
    %45 = vector.broadcast %cst_20 : f32 to vector<17x16xf32>
    %46 = arith.addf %45, %44 : vector<17x16xf32>
    %47 = arith.mulf %9, %46 : vector<17x16xf32>
    %48 = arith.truncf %47 : vector<17x16xf32> to vector<17x16xbf16>
    %c0_21 = arith.constant 0 : index
    %c0_22 = arith.constant 0 : index
    %49 = vector.load %arg5[%c0_21, %c0_22] : memref<16x12xbf16, #tpu.memory_space<vmem>>, vector<16x12xbf16>
    %cst_23 = arith.constant dense<0.000000e+00> : vector<17x12xf32>
    %50 = tpu.matmul %48, %49, %cst_23 {dimension_numbers = #tpu.dot_dimension_numbers<[1], [0], [0], [1], [0, 0, 1, 1], [], []>} : vector<17x16xbf16>, vector<16x12xbf16>, vector<17x12xf32> -> vector<17x12xf32>
    %c0_24 = arith.constant 0 : index
    %c0_25 = arith.constant 0 : index
    %51 = vector.load %arg6[%c0_24, %c0_25] : memref<1x12xf32, #tpu.memory_space<vmem>>, vector<1x12xf32>
    %52 = vector.broadcast %51 : vector<1x12xf32> to vector<17x12xf32>
    %53 = arith.addf %50, %52 : vector<17x12xf32>
    %cst_26 = arith.constant 0.000000e+00 : f32
    %54 = vector.broadcast %cst_26 : f32 to vector<17x12xf32>
    %55 = arith.maximumf %53, %54 : vector<17x12xf32>
    %56 = vector.extract_strided_slice %55 {offsets = [0, 0], sizes = [17, 8], strides = [1, 1]} : vector<17x12xf32> to vector<17x8xf32>
    %57 = vector.extract_strided_slice %55 {offsets = [0, 8], sizes = [17, 4], strides = [1, 1]} : vector<17x12xf32> to vector<17x4xf32>
    %58 = arith.truncf %57 : vector<17x4xf32> to vector<17x4xbf16>
    %cst_27 = arith.constant 0.000000e+00 : f32
    %59 = vector.broadcast %cst_27 : f32 to vector<17x8xf32>
    %c0_28 = arith.constant 0 : index
    %c0_29 = arith.constant 0 : index
    %60 = vector.load %arg2[%c0_28, %c0_29] : memref<17x16xf32, #tpu.memory_space<vmem>>, vector<17x1xf32>
    %61 = arith.truncf %60 : vector<17x1xf32> to vector<17x1xbf16>
    %cst_30 = arith.constant 0.000000e+00 : bf16
    %62 = vector.broadcast %cst_30 : bf16 to vector<5x4xbf16>
    %63 = vector.extract_strided_slice %58 {offsets = [0, 0], sizes = [12, 4], strides = [1, 1]} : vector<17x4xbf16> to vector<12x4xbf16>
    %64 = tpu.concatenate %62, %63 in 0 : vector<5x4xbf16>, vector<12x4xbf16> -> vector<17x4xbf16>
    %65 = vector.broadcast %61 : vector<17x1xbf16> to vector<17x4xbf16>
    %66 = arith.mulf %64, %65 : vector<17x4xbf16>
    %c0_31 = arith.constant 0 : index
    %c0_32 = arith.constant 0 : index
    %c0_33 = arith.constant 0 : index
    %67 = vector.load %arg7[%c0_31, %c0_32, %c0_33] : memref<9x4x8xbf16, #tpu.memory_space<vmem>>, vector<1x4x8xbf16>
    %68 = vector.shape_cast %67 : vector<1x4x8xbf16> to vector<4x8xbf16>
    %cst_34 = arith.constant dense<0.000000e+00> : vector<17x8xf32>
    %69 = tpu.matmul %66, %68, %cst_34 {dimension_numbers = #tpu.dot_dimension_numbers<[1], [0], [0], [1], [0, 0, 1, 1], [], []>} : vector<17x4xbf16>, vector<4x8xbf16>, vector<17x8xf32> -> vector<17x8xf32>
    %70 = arith.addf %59, %69 : vector<17x8xf32>
    %c0_35 = arith.constant 0 : index
    %c1 = arith.constant 1 : index
    %71 = vector.load %arg2[%c0_35, %c1] : memref<17x16xf32, #tpu.memory_space<vmem>>, vector<17x1xf32>
    %72 = arith.truncf %71 : vector<17x1xf32> to vector<17x1xbf16>
    %cst_36 = arith.constant 0.000000e+00 : bf16
    %73 = vector.broadcast %cst_36 : bf16 to vector<4x4xbf16>
    %74 = vector.extract_strided_slice %58 {offsets = [0, 0], sizes = [13, 4], strides = [1, 1]} : vector<17x4xbf16> to vector<13x4xbf16>
    %75 = tpu.concatenate %73, %74 in 0 : vector<4x4xbf16>, vector<13x4xbf16> -> vector<17x4xbf16>
    %76 = vector.broadcast %72 : vector<17x1xbf16> to vector<17x4xbf16>
    %77 = arith.mulf %75, %76 : vector<17x4xbf16>
    %c1_37 = arith.constant 1 : index
    %c0_38 = arith.constant 0 : index
    %c0_39 = arith.constant 0 : index
    %78 = vector.load %arg7[%c1_37, %c0_38, %c0_39] : memref<9x4x8xbf16, #tpu.memory_space<vmem>>, vector<1x4x8xbf16>
    %79 = vector.shape_cast %78 : vector<1x4x8xbf16> to vector<4x8xbf16>
    %cst_40 = arith.constant dense<0.000000e+00> : vector<17x8xf32>
    %80 = tpu.matmul %77, %79, %cst_40 {dimension_numbers = #tpu.dot_dimension_numbers<[1], [0], [0], [1], [0, 0, 1, 1], [], []>} : vector<17x4xbf16>, vector<4x8xbf16>, vector<17x8xf32> -> vector<17x8xf32>
    %81 = arith.addf %70, %80 : vector<17x8xf32>
    %c0_41 = arith.constant 0 : index
    %c2 = arith.constant 2 : index
    %82 = vector.load %arg2[%c0_41, %c2] : memref<17x16xf32, #tpu.memory_space<vmem>>, vector<17x1xf32>
    %83 = arith.truncf %82 : vector<17x1xf32> to vector<17x1xbf16>
    %cst_42 = arith.constant 0.000000e+00 : bf16
    %84 = vector.broadcast %cst_42 : bf16 to vector<3x4xbf16>
    %85 = vector.extract_strided_slice %58 {offsets = [0, 0], sizes = [14, 4], strides = [1, 1]} : vector<17x4xbf16> to vector<14x4xbf16>
    %86 = tpu.concatenate %84, %85 in 0 : vector<3x4xbf16>, vector<14x4xbf16> -> vector<17x4xbf16>
    %87 = vector.broadcast %83 : vector<17x1xbf16> to vector<17x4xbf16>
    %88 = arith.mulf %86, %87 : vector<17x4xbf16>
    %c2_43 = arith.constant 2 : index
    %c0_44 = arith.constant 0 : index
    %c0_45 = arith.constant 0 : index
    %89 = vector.load %arg7[%c2_43, %c0_44, %c0_45] : memref<9x4x8xbf16, #tpu.memory_space<vmem>>, vector<1x4x8xbf16>
    %90 = vector.shape_cast %89 : vector<1x4x8xbf16> to vector<4x8xbf16>
    %cst_46 = arith.constant dense<0.000000e+00> : vector<17x8xf32>
    %91 = tpu.matmul %88, %90, %cst_46 {dimension_numbers = #tpu.dot_dimension_numbers<[1], [0], [0], [1], [0, 0, 1, 1], [], []>} : vector<17x4xbf16>, vector<4x8xbf16>, vector<17x8xf32> -> vector<17x8xf32>
    %92 = arith.addf %81, %91 : vector<17x8xf32>
    %c0_47 = arith.constant 0 : index
    %c3 = arith.constant 3 : index
    %93 = vector.load %arg2[%c0_47, %c3] : memref<17x16xf32, #tpu.memory_space<vmem>>, vector<17x1xf32>
    %94 = arith.truncf %93 : vector<17x1xf32> to vector<17x1xbf16>
    %cst_48 = arith.constant 0.000000e+00 : bf16
    %95 = vector.broadcast %cst_48 : bf16 to vector<1x4xbf16>
    %96 = vector.extract_strided_slice %58 {offsets = [0, 0], sizes = [16, 4], strides = [1, 1]} : vector<17x4xbf16> to vector<16x4xbf16>
    %97 = tpu.concatenate %95, %96 in 0 : vector<1x4xbf16>, vector<16x4xbf16> -> vector<17x4xbf16>
    %98 = vector.broadcast %94 : vector<17x1xbf16> to vector<17x4xbf16>
    %99 = arith.mulf %97, %98 : vector<17x4xbf16>
    %c3_49 = arith.constant 3 : index
    %c0_50 = arith.constant 0 : index
    %c0_51 = arith.constant 0 : index
    %100 = vector.load %arg7[%c3_49, %c0_50, %c0_51] : memref<9x4x8xbf16, #tpu.memory_space<vmem>>, vector<1x4x8xbf16>
    %101 = vector.shape_cast %100 : vector<1x4x8xbf16> to vector<4x8xbf16>
    %cst_52 = arith.constant dense<0.000000e+00> : vector<17x8xf32>
    %102 = tpu.matmul %99, %101, %cst_52 {dimension_numbers = #tpu.dot_dimension_numbers<[1], [0], [0], [1], [0, 0, 1, 1], [], []>} : vector<17x4xbf16>, vector<4x8xbf16>, vector<17x8xf32> -> vector<17x8xf32>
    %103 = arith.addf %92, %102 : vector<17x8xf32>
    %c0_53 = arith.constant 0 : index
    %c4 = arith.constant 4 : index
    %104 = vector.load %arg2[%c0_53, %c4] : memref<17x16xf32, #tpu.memory_space<vmem>>, vector<17x1xf32>
    %105 = arith.truncf %104 : vector<17x1xf32> to vector<17x1xbf16>
    %106 = vector.broadcast %105 : vector<17x1xbf16> to vector<17x4xbf16>
    %107 = arith.mulf %58, %106 : vector<17x4xbf16>
    %c4_54 = arith.constant 4 : index
    %c0_55 = arith.constant 0 : index
    %c0_56 = arith.constant 0 : index
    %108 = vector.load %arg7[%c4_54, %c0_55, %c0_56] : memref<9x4x8xbf16, #tpu.memory_space<vmem>>, vector<1x4x8xbf16>
    %109 = vector.shape_cast %108 : vector<1x4x8xbf16> to vector<4x8xbf16>
    %cst_57 = arith.constant dense<0.000000e+00> : vector<17x8xf32>
    %110 = tpu.matmul %107, %109, %cst_57 {dimension_numbers = #tpu.dot_dimension_numbers<[1], [0], [0], [1], [0, 0, 1, 1], [], []>} : vector<17x4xbf16>, vector<4x8xbf16>, vector<17x8xf32> -> vector<17x8xf32>
    %111 = arith.addf %103, %110 : vector<17x8xf32>
    %c0_58 = arith.constant 0 : index
    %c5 = arith.constant 5 : index
    %112 = vector.load %arg2[%c0_58, %c5] : memref<17x16xf32, #tpu.memory_space<vmem>>, vector<17x1xf32>
    %113 = arith.truncf %112 : vector<17x1xf32> to vector<17x1xbf16>
    %cst_59 = arith.constant 0.000000e+00 : bf16
    %114 = vector.broadcast %cst_59 : bf16 to vector<1x4xbf16>
    %115 = vector.extract_strided_slice %58 {offsets = [1, 0], sizes = [16, 4], strides = [1, 1]} : vector<17x4xbf16> to vector<16x4xbf16>
    %116 = tpu.concatenate %115, %114 in 0 : vector<16x4xbf16>, vector<1x4xbf16> -> vector<17x4xbf16>
    %117 = vector.broadcast %113 : vector<17x1xbf16> to vector<17x4xbf16>
    %118 = arith.mulf %116, %117 : vector<17x4xbf16>
    %c5_60 = arith.constant 5 : index
    %c0_61 = arith.constant 0 : index
    %c0_62 = arith.constant 0 : index
    %119 = vector.load %arg7[%c5_60, %c0_61, %c0_62] : memref<9x4x8xbf16, #tpu.memory_space<vmem>>, vector<1x4x8xbf16>
    %120 = vector.shape_cast %119 : vector<1x4x8xbf16> to vector<4x8xbf16>
    %cst_63 = arith.constant dense<0.000000e+00> : vector<17x8xf32>
    %121 = tpu.matmul %118, %120, %cst_63 {dimension_numbers = #tpu.dot_dimension_numbers<[1], [0], [0], [1], [0, 0, 1, 1], [], []>} : vector<17x4xbf16>, vector<4x8xbf16>, vector<17x8xf32> -> vector<17x8xf32>
    %122 = arith.addf %111, %121 : vector<17x8xf32>
    %c0_64 = arith.constant 0 : index
    %c6 = arith.constant 6 : index
    %123 = vector.load %arg2[%c0_64, %c6] : memref<17x16xf32, #tpu.memory_space<vmem>>, vector<17x1xf32>
    %124 = arith.truncf %123 : vector<17x1xf32> to vector<17x1xbf16>
    %cst_65 = arith.constant 0.000000e+00 : bf16
    %125 = vector.broadcast %cst_65 : bf16 to vector<3x4xbf16>
    %126 = vector.extract_strided_slice %58 {offsets = [3, 0], sizes = [14, 4], strides = [1, 1]} : vector<17x4xbf16> to vector<14x4xbf16>
    %127 = tpu.concatenate %126, %125 in 0 : vector<14x4xbf16>, vector<3x4xbf16> -> vector<17x4xbf16>
    %128 = vector.broadcast %124 : vector<17x1xbf16> to vector<17x4xbf16>
    %129 = arith.mulf %127, %128 : vector<17x4xbf16>
    %c6_66 = arith.constant 6 : index
    %c0_67 = arith.constant 0 : index
    %c0_68 = arith.constant 0 : index
    %130 = vector.load %arg7[%c6_66, %c0_67, %c0_68] : memref<9x4x8xbf16, #tpu.memory_space<vmem>>, vector<1x4x8xbf16>
    %131 = vector.shape_cast %130 : vector<1x4x8xbf16> to vector<4x8xbf16>
    %cst_69 = arith.constant dense<0.000000e+00> : vector<17x8xf32>
    %132 = tpu.matmul %129, %131, %cst_69 {dimension_numbers = #tpu.dot_dimension_numbers<[1], [0], [0], [1], [0, 0, 1, 1], [], []>} : vector<17x4xbf16>, vector<4x8xbf16>, vector<17x8xf32> -> vector<17x8xf32>
    %133 = arith.addf %122, %132 : vector<17x8xf32>
    %c0_70 = arith.constant 0 : index
    %c7 = arith.constant 7 : index
    %134 = vector.load %arg2[%c0_70, %c7] : memref<17x16xf32, #tpu.memory_space<vmem>>, vector<17x1xf32>
    %135 = arith.truncf %134 : vector<17x1xf32> to vector<17x1xbf16>
    %cst_71 = arith.constant 0.000000e+00 : bf16
    %136 = vector.broadcast %cst_71 : bf16 to vector<4x4xbf16>
    %137 = vector.extract_strided_slice %58 {offsets = [4, 0], sizes = [13, 4], strides = [1, 1]} : vector<17x4xbf16> to vector<13x4xbf16>
    %138 = tpu.concatenate %137, %136 in 0 : vector<13x4xbf16>, vector<4x4xbf16> -> vector<17x4xbf16>
    %139 = vector.broadcast %135 : vector<17x1xbf16> to vector<17x4xbf16>
    %140 = arith.mulf %138, %139 : vector<17x4xbf16>
    %c7_72 = arith.constant 7 : index
    %c0_73 = arith.constant 0 : index
    %c0_74 = arith.constant 0 : index
    %141 = vector.load %arg7[%c7_72, %c0_73, %c0_74] : memref<9x4x8xbf16, #tpu.memory_space<vmem>>, vector<1x4x8xbf16>
    %142 = vector.shape_cast %141 : vector<1x4x8xbf16> to vector<4x8xbf16>
    %cst_75 = arith.constant dense<0.000000e+00> : vector<17x8xf32>
    %143 = tpu.matmul %140, %142, %cst_75 {dimension_numbers = #tpu.dot_dimension_numbers<[1], [0], [0], [1], [0, 0, 1, 1], [], []>} : vector<17x4xbf16>, vector<4x8xbf16>, vector<17x8xf32> -> vector<17x8xf32>
    %144 = arith.addf %133, %143 : vector<17x8xf32>
    %c0_76 = arith.constant 0 : index
    %c8 = arith.constant 8 : index
    %145 = vector.load %arg2[%c0_76, %c8] : memref<17x16xf32, #tpu.memory_space<vmem>>, vector<17x1xf32>
    %146 = arith.truncf %145 : vector<17x1xf32> to vector<17x1xbf16>
    %cst_77 = arith.constant 0.000000e+00 : bf16
    %147 = vector.broadcast %cst_77 : bf16 to vector<5x4xbf16>
    %148 = vector.extract_strided_slice %58 {offsets = [5, 0], sizes = [12, 4], strides = [1, 1]} : vector<17x4xbf16> to vector<12x4xbf16>
    %149 = tpu.concatenate %148, %147 in 0 : vector<12x4xbf16>, vector<5x4xbf16> -> vector<17x4xbf16>
    %150 = vector.broadcast %146 : vector<17x1xbf16> to vector<17x4xbf16>
    %151 = arith.mulf %149, %150 : vector<17x4xbf16>
    %c8_78 = arith.constant 8 : index
    %c0_79 = arith.constant 0 : index
    %c0_80 = arith.constant 0 : index
    %152 = vector.load %arg7[%c8_78, %c0_79, %c0_80] : memref<9x4x8xbf16, #tpu.memory_space<vmem>>, vector<1x4x8xbf16>
    %153 = vector.shape_cast %152 : vector<1x4x8xbf16> to vector<4x8xbf16>
    %cst_81 = arith.constant dense<0.000000e+00> : vector<17x8xf32>
    %154 = tpu.matmul %151, %153, %cst_81 {dimension_numbers = #tpu.dot_dimension_numbers<[1], [0], [0], [1], [0, 0, 1, 1], [], []>} : vector<17x4xbf16>, vector<4x8xbf16>, vector<17x8xf32> -> vector<17x8xf32>
    %155 = arith.addf %144, %154 : vector<17x8xf32>
    %c0_82 = arith.constant 0 : index
    %c0_83 = arith.constant 0 : index
    %156 = vector.load %arg8[%c0_82, %c0_83] : memref<1x8xf32, #tpu.memory_space<vmem>>, vector<1x8xf32>
    %157 = vector.broadcast %156 : vector<1x8xf32> to vector<17x8xf32>
    %158 = arith.addf %155, %157 : vector<17x8xf32>
    %cst_84 = arith.constant 0.000000e+00 : f32
    %159 = vector.broadcast %cst_84 : f32 to vector<17x8xf32>
    %160 = arith.maximumf %158, %159 : vector<17x8xf32>
    %c0_85 = arith.constant 0 : index
    %c9 = arith.constant 9 : index
    %161 = vector.load %arg2[%c0_85, %c9] : memref<17x16xf32, #tpu.memory_space<vmem>>, vector<17x1xf32>
    %162 = tpu.concatenate %56, %160 in 1 : vector<17x8xf32>, vector<17x8xf32> -> vector<17x16xf32>
    %163 = vector.broadcast %161 : vector<17x1xf32> to vector<17x16xf32>
    %164 = arith.mulf %163, %47 : vector<17x16xf32>
    %165 = arith.addf %47, %164 : vector<17x16xf32>
    %cst_86 = arith.constant 1.000000e+00 : f32
    %166 = vector.broadcast %cst_86 : f32 to vector<17x1xf32>
    %167 = arith.subf %166, %161 : vector<17x1xf32>
    %168 = vector.broadcast %167 : vector<17x1xf32> to vector<17x16xf32>
    %169 = arith.mulf %168, %162 : vector<17x16xf32>
    %170 = arith.addf %165, %169 : vector<17x16xf32>
    %171 = arith.truncf %170 : vector<17x16xf32> to vector<17x16xbf16>
    %c0_87 = arith.constant 0 : index
    %c0_88 = arith.constant 0 : index
    %172 = vector.load %arg9[%c0_87, %c0_88] : memref<16x32xbf16, #tpu.memory_space<vmem>>, vector<16x32xbf16>
    %cst_89 = arith.constant dense<0.000000e+00> : vector<17x32xf32>
    %173 = tpu.matmul %171, %172, %cst_89 {dimension_numbers = #tpu.dot_dimension_numbers<[1], [0], [0], [1], [0, 0, 1, 1], [], []>} : vector<17x16xbf16>, vector<16x32xbf16>, vector<17x32xf32> -> vector<17x32xf32>
    %c0_90 = arith.constant 0 : index
    %c0_91 = arith.constant 0 : index
    %174 = vector.load %arg10[%c0_90, %c0_91] : memref<1x32xf32, #tpu.memory_space<vmem>>, vector<1x32xf32>
    %175 = vector.broadcast %174 : vector<1x32xf32> to vector<17x32xf32>
    %176 = arith.addf %173, %175 : vector<17x32xf32>
    %177 = vector.shape_cast %176 : vector<17x32xf32> to vector<1x17x32xf32>
    %c0_92 = arith.constant 0 : index
    %c0_93 = arith.constant 0 : index
    %c0_94 = arith.constant 0 : index
    %178 = vector.load %arg11[%c0_92, %c0_93, %c0_94] : memref<1x17x32xf32, #tpu.memory_space<vmem>>, vector<1x17x32xf32>
    tpu.vector_store %arg11[%c0_92, %c0_93, %c0_94], %177 {strides = array<i32>} : memref<1x17x32xf32, #tpu.memory_space<vmem>>, vector<1x17x32xf32>,
    return
  }
  func.func @transform_0(%arg0: i32) -> (i32, i32, i32) {
    %c0_i32 = arith.constant 0 : i32
    %c0_i32_0 = arith.constant 0 : i32
    %c0_i32_1 = arith.constant 0 : i32
    return %arg0, %c0_i32, %c0_i32_0 : i32, i32, i32
  }
  func.func @transform_1(%arg0: i32) -> (i32, i32) {
    %c0_i32 = arith.constant 0 : i32
    %c0_i32_0 = arith.constant 0 : i32
    %c0_i32_1 = arith.constant 0 : i32
    return %c0_i32, %c0_i32_0 : i32, i32
  }
  func.func @transform_2(%arg0: i32) -> (i32, i32) {
    %c0_i32 = arith.constant 0 : i32
    %c0_i32_0 = arith.constant 0 : i32
    %c0_i32_1 = arith.constant 0 : i32
    return %c0_i32, %c0_i32_0 : i32, i32
  }
  func.func @transform_3(%arg0: i32) -> (i32, i32) {
    %c0_i32 = arith.constant 0 : i32
    %c0_i32_0 = arith.constant 0 : i32
    %c0_i32_1 = arith.constant 0 : i32
    return %c0_i32, %c0_i32_0 : i32, i32
  }
  func.func @transform_4(%arg0: i32) -> (i32, i32) {
    %c0_i32 = arith.constant 0 : i32
    %c0_i32_0 = arith.constant 0 : i32
    %c0_i32_1 = arith.constant 0 : i32
    return %c0_i32, %c0_i32_0 : i32, i32
  }
  func.func @transform_5(%arg0: i32) -> (i32, i32) {
    %c0_i32 = arith.constant 0 : i32
    %c0_i32_0 = arith.constant 0 : i32
    %c0_i32_1 = arith.constant 0 : i32
    return %c0_i32, %c0_i32_0 : i32, i32
  }
  func.func @transform_6(%arg0: i32) -> (i32, i32, i32) {
    %c0_i32 = arith.constant 0 : i32
    %c0_i32_0 = arith.constant 0 : i32
    %c0_i32_1 = arith.constant 0 : i32
    %c0_i32_2 = arith.constant 0 : i32
    return %c0_i32, %c0_i32_0, %c0_i32_1 : i32, i32, i32
  }
  func.func @transform_7(%arg0: i32) -> (i32, i32) {
    %c0_i32 = arith.constant 0 : i32
    %c0_i32_0 = arith.constant 0 : i32
    %c0_i32_1 = arith.constant 0 : i32
    return %c0_i32, %c0_i32_0 : i32, i32
  }
  func.func @transform_8(%arg0: i32) -> (i32, i32) {
    %c0_i32 = arith.constant 0 : i32
    %c0_i32_0 = arith.constant 0 : i32
    %c0_i32_1 = arith.constant 0 : i32
    return %c0_i32, %c0_i32_0 : i32, i32
  }
  func.func @transform_9(%arg0: i32) -> (i32, i32) {
    %c0_i32 = arith.constant 0 : i32
    %c0_i32_0 = arith.constant 0 : i32
    %c0_i32_1 = arith.constant 0 : i32
    return %c0_i32, %c0_i32_0 : i32, i32
  }
  func.func @transform_10(%arg0: i32) -> (i32, i32, i32) {
    %c0_i32 = arith.constant 0 : i32
    %c0_i32_0 = arith.constant 0 : i32
    %c0_i32_1 = arith.constant 0 : i32
    return %arg0, %c0_i32, %c0_i32_0 : i32, i32, i32
  }
}

</mosaic_0001>

<llo_original>
// kernel: conv_adapter3_forward.1
$region0: #{conv_adapter3_forward.1}
  #allocation0 [shape = 'u32[]', space=smem, size = 0x4, offset = 0x4, fixed_abs, tag = 'smem constant byte address 0x4 - core index']
  #allocation1 [shape = 'u32[144,128]{1,0:T(1,128)}', space=vmem, size = 0x12000, scoped, tag = 'internal scratch']
  %s0 = inlined_call_operand.vmem [shape: f32[2,17,32], index: 0, kind: input, shape index: {}]
  %s1 = inlined_call_operand.vmem [shape: f32[17,16], index: 1, kind: input, shape index: {}]
  %s2 = inlined_call_operand.vmem [shape: bf16[32,16], index: 2, kind: input, shape index: {}]
  %s3 = inlined_call_operand.vmem [shape: f32[1,16], index: 3, kind: input, shape index: {}]
  %s4 = inlined_call_operand.vmem [shape: bf16[16,12], index: 4, kind: input, shape index: {}]
  %s5 = inlined_call_operand.vmem [shape: f32[1,12], index: 5, kind: input, shape index: {}]
  %s6 = inlined_call_operand.vmem [shape: bf16[9,4,8], index: 6, kind: input, shape index: {}]
  %s7 = inlined_call_operand.vmem [shape: f32[1,8], index: 7, kind: input, shape index: {}]
  %s8 = inlined_call_operand.vmem [shape: bf16[16,32], index: 8, kind: input, shape index: {}]
  %s9 = inlined_call_operand.vmem [shape: f32[1,32], index: 9, kind: input, shape index: {}]
  %s10 = inlined_call_operand.vmem [shape: f32[2,17,32], index: 10, kind: output, shape index: {}]
  %s11 = sld [smem:[#allocation0]]
  $region73: #{conv_adapter3_forward.1} parent=0
    _
  %s13 = ssub.s32 1, %s11
  %s14 = scalar_select 0, %s13, %s11
  loop: start=0, step=1, limit=4
  $region2: #{conv_adapter3_forward.1} parent=0 // loop_pre_header
    _
  $region3: #{conv_adapter3_forward.1} parent=0 // loop_header
    %s16 = sphi 0, %s20
    %p17 = scmp.ge.s32.totalorder %s16, 4
    %s26 = sphi 0, %s28
    %s29 = sphi 0, %s26
    %s30 = sphi 0, %s29
    %s46 = sphi 0, %s30
    %s50 = sphi 0, %s50
    %s52 = sphi 0, %s50
    %s53 = sphi 0, %s52
    %s67 = sphi 0, %s53
    %s71 = sphi 0, %s71
    %s73 = sphi 0, %s71
    %s74 = sphi 0, %s73
    %s88 = sphi 0, %s74
    %s92 = sphi 0, %s92
    %s94 = sphi 0, %s92
    %s95 = sphi 0, %s94
    %s109 = sphi 0, %s95
    %s113 = sphi 0, %s113
    %s115 = sphi 0, %s113
    %s116 = sphi 0, %s115
    %s130 = sphi 0, %s116
    %s134 = sphi 0, %s134
    %s136 = sphi 0, %s134
    %s137 = sphi 0, %s136
    %s151 = sphi 0, %s137
    %s155 = sphi 0, %s155
    %s157 = sphi 0, %s155
    %s158 = sphi 0, %s157
    %s172 = sphi 0, %s158
    %s176 = sphi 0, %s176
    %s178 = sphi 0, %s176
    %s179 = sphi 0, %s178
    %s193 = sphi 0, %s179
    %s197 = sphi 0, %s197
    %s199 = sphi 0, %s197
    %s200 = sphi 0, %s199
    %s214 = sphi 0, %s200
    %s218 = sphi 0, %s218
    %s220 = sphi 0, %s218
    %s221 = sphi 0, %s220
    %s235 = sphi 0, %s221
    %s241 = sphi 0, %s243
    %s244 = sphi 0, %s241
    %s245 = sphi 0, %s244
    %s261 = sphi 0, %s245
  $region4: #{conv_adapter3_forward.1} parent=0 // loop_header_branch
    %19 = sbr.rel (%p17) target = $region8
  $region5: #{conv_adapter3_forward.1} parent=0 // loop_body
    %s21 = ssub.s32 %s16, 1
    %s22 = ssub.s32 %s16, 2
    %s23 = sadd.s32 %s16, 1
    %s24 = ssub.s32 %s16, %s23
    %p25 = scmp.eq.s32.totalorder %s24, 0
    %s27 = sadd.s32 %s26, 1
    %s28 = scalar_select %p25, %s26, %s27
    %p31 = pneg %p25
    %p32 = scmp.eq.s32.totalorder %s16, 1
    %p33 = por %p31, %p32
    %p34 = scmp.ne.s32.totalorder %s26, %s29
    %p35 = scmp.eq.s32.totalorder %s16, 0
    %p36 = por %p34, %p35
    %p37 = scmp.ne.s32.totalorder %s26, %s29
    %p38 = scmp.eq.s32.totalorder %s21, 1
    %p39 = por %p37, %p38
    %p40 = scmp.ne.s32.totalorder %s29, %s30
    %p41 = scmp.eq.s32.totalorder %s21, 0
    %p42 = por %p40, %p41
    %p43 = scmp.ne.s32.totalorder %s29, %s30
    %p44 = scmp.eq.s32.totalorder %s22, 1
    %p45 = por %p43, %p44
    %p47 = scmp.ne.s32.totalorder %s30, %s46
    %p48 = scmp.eq.s32.totalorder %s22, 0
    %p49 = por %p47, %p48
    %s51 = sadd.s32 %s50, 1
    %p54 = scmp.eq.s32.totalorder %s16, 1
    %p55 = scmp.ne.s32.totalorder %s50, %s52
    %p56 = scmp.eq.s32.totalorder %s16, 0
    %p57 = por %p55, %p56
    %p58 = scmp.ne.s32.totalorder %s50, %s52
    %p59 = scmp.eq.s32.totalorder %s21, 1
    %p60 = por %p58, %p59
    %p61 = scmp.ne.s32.totalorder %s52, %s53
    %p62 = scmp.eq.s32.totalorder %s21, 0
    %p63 = por %p61, %p62
    %p64 = scmp.ne.s32.totalorder %s52, %s53
    %p65 = scmp.eq.s32.totalorder %s22, 1
    %p66 = por %p64, %p65
    %p68 = scmp.ne.s32.totalorder %s53, %s67
    %p69 = scmp.eq.s32.totalorder %s22, 0
    %p70 = por %p68, %p69
    %s72 = sadd.s32 %s71, 1
    %p75 = scmp.eq.s32.totalorder %s16, 1
    %p76 = scmp.ne.s32.totalorder %s71, %s73
    %p77 = scmp.eq.s32.totalorder %s16, 0
    %p78 = por %p76, %p77
    %p79 = scmp.ne.s32.totalorder %s71, %s73
    %p80 = scmp.eq.s32.totalorder %s21, 1
    %p81 = por %p79, %p80
    %p82 = scmp.ne.s32.totalorder %s73, %s74
    %p83 = scmp.eq.s32.totalorder %s21, 0
    %p84 = por %p82, %p83
    %p85 = scmp.ne.s32.totalorder %s73, %s74
    %p86 = scmp.eq.s32.totalorder %s22, 1
    %p87 = por %p85, %p86
    %p89 = scmp.ne.s32.totalorder %s74, %s88
    %p90 = scmp.eq.s32.totalorder %s22, 0
    %p91 = por %p89, %p90
    %s93 = sadd.s32 %s92, 1
    %p96 = scmp.eq.s32.totalorder %s16, 1
    %p97 = scmp.ne.s32.totalorder %s92, %s94
    %p98 = scmp.eq.s32.totalorder %s16, 0
    %p99 = por %p97, %p98
    %p100 = scmp.ne.s32.totalorder %s92, %s94
    %p101 = scmp.eq.s32.totalorder %s21, 1
    %p102 = por %p100, %p101
    %p103 = scmp.ne.s32.totalorder %s94, %s95
    %p104 = scmp.eq.s32.totalorder %s21, 0
    %p105 = por %p103, %p104
    %p106 = scmp.ne.s32.totalorder %s94, %s95
    %p107 = scmp.eq.s32.totalorder %s22, 1
    %p108 = por %p106, %p107
    %p110 = scmp.ne.s32.totalorder %s95, %s109
    %p111 = scmp.eq.s32.totalorder %s22, 0
    %p112 = por %p110, %p111
    %s114 = sadd.s32 %s113, 1
    %p117 = scmp.eq.s32.totalorder %s16, 1
    %p118 = scmp.ne.s32.totalorder %s113, %s115
    %p119 = scmp.eq.s32.totalorder %s16, 0
    %p120 = por %p118, %p119
    %p121 = scmp.ne.s32.totalorder %s113, %s115
    %p122 = scmp.eq.s32.totalorder %s21, 1
    %p123 = por %p121, %p122
    %p124 = scmp.ne.s32.totalorder %s115, %s116
    %p125 = scmp.eq.s32.totalorder %s21, 0
    %p126 = por %p124, %p125
    %p127 = scmp.ne.s32.totalorder %s115, %s116
    %p128 = scmp.eq.s32.totalorder %s22, 1
    %p129 = por %p127, %p128
    %p131 = scmp.ne.s32.totalorder %s116, %s130
    %p132 = scmp.eq.s32.totalorder %s22, 0
    %p133 = por %p131, %p132
    %s135 = sadd.s32 %s134, 1
    %p138 = scmp.eq.s32.totalorder %s16, 1
    %p139 = scmp.ne.s32.totalorder %s134, %s136
    %p140 = scmp.eq.s32.totalorder %s16, 0
    %p141 = por %p139, %p140
    %p142 = scmp.ne.s32.totalorder %s134, %s136
    %p143 = scmp.eq.s32.totalorder %s21, 1
    %p144 = por %p142, %p143
    %p145 = scmp.ne.s32.totalorder %s136, %s137
    %p146 = scmp.eq.s32.totalorder %s21, 0
    %p147 = por %p145, %p146
    %p148 = scmp.ne.s32.totalorder %s136, %s137
    %p149 = scmp.eq.s32.totalorder %s22, 1
    %p150 = por %p148, %p149
    %p152 = scmp.ne.s32.totalorder %s137, %s151
    %p153 = scmp.eq.s32.totalorder %s22, 0
    %p154 = por %p152, %p153
    %s156 = sadd.s32 %s155, 1
    %p159 = scmp.eq.s32.totalorder %s16, 1
    %p160 = scmp.ne.s32.totalorder %s155, %s157
    %p161 = scmp.eq.s32.totalorder %s16, 0
    %p162 = por %p160, %p161
    %p163 = scmp.ne.s32.totalorder %s155, %s157
    %p164 = scmp.eq.s32.totalorder %s21, 1
    %p165 = por %p163, %p164
    %p166 = scmp.ne.s32.totalorder %s157, %s158
    %p167 = scmp.eq.s32.totalorder %s21, 0
    %p168 = por %p166, %p167
    %p169 = scmp.ne.s32.totalorder %s157, %s158
    %p170 = scmp.eq.s32.totalorder %s22, 1
    %p171 = por %p169, %p170
    %p173 = scmp.ne.s32.totalorder %s158, %s172
    %p174 = scmp.eq.s32.totalorder %s22, 0
    %p175 = por %p173, %p174
    %s177 = sadd.s32 %s176, 1
    %p180 = scmp.eq.s32.totalorder %s16, 1
    %p181 = scmp.ne.s32.totalorder %s176, %s178
    %p182 = scmp.eq.s32.totalorder %s16, 0
    %p183 = por %p181, %p182
    %p184 = scmp.ne.s32.totalorder %s176, %s178
    %p185 = scmp.eq.s32.totalorder %s21, 1
    %p186 = por %p184, %p185
    %p187 = scmp.ne.s32.totalorder %s178, %s179
    %p188 = scmp.eq.s32.totalorder %s21, 0
    %p189 = por %p187, %p188
    %p190 = scmp.ne.s32.totalorder %s178, %s179
    %p191 = scmp.eq.s32.totalorder %s22, 1
    %p192 = por %p190, %p191
    %p194 = scmp.ne.s32.totalorder %s179, %s193
    %p195 = scmp.eq.s32.totalorder %s22, 0
    %p196 = por %p194, %p195
    %s198 = sadd.s32 %s197, 1
    %p201 = scmp.eq.s32.totalorder %s16, 1
    %p202 = scmp.ne.s32.totalorder %s197, %s199
    %p203 = scmp.eq.s32.totalorder %s16, 0
    %p204 = por %p202, %p203
    %p205 = scmp.ne.s32.totalorder %s197, %s199
    %p206 = scmp.eq.s32.totalorder %s21, 1
    %p207 = por %p205, %p206
    %p208 = scmp.ne.s32.totalorder %s199, %s200
    %p209 = scmp.eq.s32.totalorder %s21, 0
    %p210 = por %p208, %p209
    %p211 = scmp.ne.s32.totalorder %s199, %s200
    %p212 = scmp.eq.s32.totalorder %s22, 1
    %p213 = por %p211, %p212
    %p215 = scmp.ne.s32.totalorder %s200, %s214
    %p216 = scmp.eq.s32.totalorder %s22, 0
    %p217 = por %p215, %p216
    %s219 = sadd.s32 %s218, 1
    %p222 = scmp.eq.s32.totalorder %s16, 1
    %p223 = scmp.ne.s32.totalorder %s218, %s220
    %p224 = scmp.eq.s32.totalorder %s16, 0
    %p225 = por %p223, %p224
    %p226 = scmp.ne.s32.totalorder %s218, %s220
    %p227 = scmp.eq.s32.totalorder %s21, 1
    %p228 = por %p226, %p227
    %p229 = scmp.ne.s32.totalorder %s220, %s221
    %p230 = scmp.eq.s32.totalorder %s21, 0
    %p231 = por %p229, %p230
    %p232 = scmp.ne.s32.totalorder %s220, %s221
    %p233 = scmp.eq.s32.totalorder %s22, 1
    %p234 = por %p232, %p233
    %p236 = scmp.ne.s32.totalorder %s221, %s235
    %p237 = scmp.eq.s32.totalorder %s22, 0
    %p238 = por %p236, %p237
    %s239 = ssub.s32 %s16, %s23
    %p240 = scmp.eq.s32.totalorder %s239, 0
    %s242 = sadd.s32 %s241, 1
    %s243 = scalar_select %p240, %s241, %s242
    %p246 = pneg %p240
    %p247 = scmp.eq.s32.totalorder %s16, 1
    %p248 = por %p246, %p247
    %p249 = scmp.ne.s32.totalorder %s241, %s244
    %p250 = scmp.eq.s32.totalorder %s16, 0
    %p251 = por %p249, %p250
    %p252 = scmp.ne.s32.totalorder %s241, %s244
    %p253 = scmp.eq.s32.totalorder %s21, 1
    %p254 = por %p252, %p253
    %p255 = scmp.ne.s32.totalorder %s244, %s245
    %p256 = scmp.eq.s32.totalorder %s21, 0
    %p257 = por %p255, %p256
    %p258 = scmp.ne.s32.totalorder %s244, %s245
    %p259 = scmp.eq.s32.totalorder %s22, 1
    %p260 = por %p258, %p259
    %p262 = scmp.ne.s32.totalorder %s245, %s261
    %p263 = scmp.eq.s32.totalorder %s22, 0
    %p264 = por %p262, %p263
    %p265 = scmp.le.s32.totalorder 1, %s16
    %p266 = scmp.lt.s32.totalorder %s16, 3
    %p267 = pnand %p265, %p266
    %p268 = pneg %p267
    // Predicated region
    $region9: #{conv_adapter3_forward.1} parent=5 // pred_check
      _
    $region10: #{conv_adapter3_forward.1} parent=5 // pred_check_branch
      %270 = sbr.rel (%p267) target = $region12
    $region11: #{conv_adapter3_forward.1} parent=5 // pred_region
      %s271 = ssub.s32 %s16, 1
      // Predicated region
      $region13: #{conv_adapter3_forward.1} parent=11 // pred_check
        %p272 = pneg %p63
      $region14: #{conv_adapter3_forward.1} parent=11 // pred_check_branch
        %274 = sbr.rel (%p272) target = $region16
      $region15: #{conv_adapter3_forward.1} parent=11 // pred_region
        _
      $region16: #{conv_adapter3_forward.1} parent=11 // pred_fallthru
        _
      // Predicated region
      $region17: #{conv_adapter3_forward.1} parent=11 // pred_check
        %p275 = pneg %p84
      $region18: #{conv_adapter3_forward.1} parent=11 // pred_check_branch
        %277 = sbr.rel (%p275) target = $region20
      $region19: #{conv_adapter3_forward.1} parent=11 // pred_region
        _
      $region20: #{conv_adapter3_forward.1} parent=11 // pred_fallthru
        _
      // Predicated region
      $region21: #{conv_adapter3_forward.1} parent=11 // pred_check
        %p278 = pneg %p105
      $region22: #{conv_adapter3_forward.1} parent=11 // pred_check_branch
        %280 = sbr.rel (%p278) target = $region24
      $region23: #{conv_adapter3_forward.1} parent=11 // pred_region
        _
      $region24: #{conv_adapter3_forward.1} parent=11 // pred_fallthru
        _
      // Predicated region
      $region25: #{conv_adapter3_forward.1} parent=11 // pred_check
        %p281 = pneg %p126
      $region26: #{conv_adapter3_forward.1} parent=11 // pred_check_branch
        %283 = sbr.rel (%p281) target = $region28
      $region27: #{conv_adapter3_forward.1} parent=11 // pred_region
        _
      $region28: #{conv_adapter3_forward.1} parent=11 // pred_fallthru
        _
      // Predicated region
      $region29: #{conv_adapter3_forward.1} parent=11 // pred_check
        %p284 = pneg %p147
      $region30: #{conv_adapter3_forward.1} parent=11 // pred_check_branch
        %286 = sbr.rel (%p284) target = $region32
      $region31: #{conv_adapter3_forward.1} parent=11 // pred_region
        _
      $region32: #{conv_adapter3_forward.1} parent=11 // pred_fallthru
        _
      // Predicated region
      $region33: #{conv_adapter3_forward.1} parent=11 // pred_check
        %p287 = pneg %p168
      $region34: #{conv_adapter3_forward.1} parent=11 // pred_check_branch
        %289 = sbr.rel (%p287) target = $region36
      $region35: #{conv_adapter3_forward.1} parent=11 // pred_region
        _
      $region36: #{conv_adapter3_forward.1} parent=11 // pred_fallthru
        _
      // Predicated region
      $region37: #{conv_adapter3_forward.1} parent=11 // pred_check
        %p290 = pneg %p189
      $region38: #{conv_adapter3_forward.1} parent=11 // pred_check_branch
        %292 = sbr.rel (%p290) target = $region40
      $region39: #{conv_adapter3_forward.1} parent=11 // pred_region
        _
      $region40: #{conv_adapter3_forward.1} parent=11 // pred_fallthru
        _
      // Predicated region
      $region41: #{conv_adapter3_forward.1} parent=11 // pred_check
        %p293 = pneg %p210
      $region42: #{conv_adapter3_forward.1} parent=11 // pred_check_branch
        %295 = sbr.rel (%p293) target = $region44
      $region43: #{conv_adapter3_forward.1} parent=11 // pred_region
        _
      $region44: #{conv_adapter3_forward.1} parent=11 // pred_fallthru
        _
      // Predicated region
      $region45: #{conv_adapter3_forward.1} parent=11 // pred_check
        %p296 = pneg %p231
      $region46: #{conv_adapter3_forward.1} parent=11 // pred_check_branch
        %298 = sbr.rel (%p296) target = $region48
      $region47: #{conv_adapter3_forward.1} parent=11 // pred_region
        _
      $region48: #{conv_adapter3_forward.1} parent=11 // pred_fallthru
        _
    $region12: #{conv_adapter3_forward.1} parent=5 // pred_fallthru
      _
    %p299 = scmp.lt.s32.totalorder %s16, 2
    // Predicated region
    $region49: #{conv_adapter3_forward.1} parent=5 // pred_check
      %p300 = pneg %p299
    $region50: #{conv_adapter3_forward.1} parent=5 // pred_check_branch
      %302 = sbr.rel (%p300) target = $region52
    $region51: #{conv_adapter3_forward.1} parent=5 // pred_region
      // Predicated region
      $region53: #{conv_adapter3_forward.1} parent=51 // pred_check
        %p303 = pneg %p36
      $region54: #{conv_adapter3_forward.1} parent=51 // pred_check_branch
        %305 = sbr.rel (%p303) target = $region56
      $region55: #{conv_adapter3_forward.1} parent=51 // pred_region
        %p306 = scmp.lt.s32.totalorder %s16, 1
        %s307 = scalar_select %p306, %s16, 1
        %s308 = smul.addr %s307, 3
        %s309 = smul.addr %s308, 8
        %s310 = scalar_lea.vmem %s0, %s309
      $region56: #{conv_adapter3_forward.1} parent=51 // pred_fallthru
        _
    $region52: #{conv_adapter3_forward.1} parent=5 // pred_fallthru
      _
    %p311 = scmp.le.s32.totalorder 1, %s16
    %p312 = scmp.lt.s32.totalorder %s16, 3
    %p313 = pnand %p311, %p312
    %p314 = pneg %p313
    // Predicated region
    $region57: #{conv_adapter3_forward.1} parent=5 // pred_check
      _
    $region58: #{conv_adapter3_forward.1} parent=5 // pred_check_branch
      %316 = sbr.rel (%p313) target = $region60
    $region59: #{conv_adapter3_forward.1} parent=5 // pred_region
      %s317 = ssub.s32 %s16, 1
      %p318 = scmp.lt.s32.totalorder %s21, 1
      %s319 = scalar_select %p318, %s21, 1
      %s320 = smul.addr %s319, 3
      %s321 = smul.addr %s320, 8
      %s322 = scalar_lea.vmem %s0, %s321
      %p323 = pneg %p42
      %p324 = pneg %p39
      %p325 = pneg %p63
      %p326 = pneg %p60
      %p327 = pneg %p84
      %p328 = pneg %p81
      %p329 = pneg %p105
      %p330 = pneg %p102
      %p331 = pneg %p126
      %p332 = pneg %p123
      %p333 = pneg %p147
      %p334 = pneg %p144
      %p335 = pneg %p168
      %p336 = pneg %p165
      %p337 = pneg %p189
      %p338 = pneg %p186
      %p339 = pneg %p210
      %p340 = pneg %p207
      %p341 = pneg %p231
      %p342 = pneg %p228
      %p343 = pneg %p257
      %p344 = pneg %p254
      %p345 = scmp.lt.s32.totalorder %s21, 1
      %s346 = scalar_select %p345, %s21, 1
      %s347 = smul.addr %s346, 3
      %s348 = smul.addr %s347, 8
      %s349 = scalar_lea.vmem %s10, %s348
      %p350 = scmp.lt.s32.totalorder %s21, 1
      %s351 = scalar_select %p350, %s21, 1
      %s352 = smul.addr %s351, 3
      %s353 = smul.addr %s352, 8
      %s354 = scalar_lea.vmem %s0, %s353
      %p355 = scmp.lt.s32.totalorder %s21, 1
      %s356 = scalar_select %p355, %s21, 1
      %s357 = smul.addr %s356, 3
      %s358 = smul.addr %s357, 8
      %s359 = scalar_lea.vmem %s10, %s358
      %v361 = vld [vmem:[%s354] sm:$0xff]
      %v362 = vld [vmem:[%s354 + $0x8] sm:$0xff]
      %v363 = vld [vmem:[%s354 + $0x10] sm:$0x1]
      %v364 = vpack.c.bf16 %v362, %v361
      %v365 = vpack.c.bf16 %v363, %v363
      %v366 = vld [vmem:[%s2] sm:$0xf]
      %v367 = vld [vmem:[%s2 + $0x4] sm:$0xf]
      %v368 = vld [vmem:[%s2 + $0x8] sm:$0xf]
      %v369 = vld [vmem:[%s2 + $0xc] sm:$0xf]
      %v370 = vld [vmem:[%s3] sm:$0x1]
      %v372 = vlaneseq
      %v373 = vshrl.u32 %v372, 7
      %v374 = vsub.s32 0, %v373
      %v375 = vrot.slane %v370, %v374
      %v381 = vunpack.c.l.b16 %v366
      %v382 = vunpack.c.l.b16 %v367
      %v383 = vunpack.c.l.b16 %v368
      %v384 = vunpack.c.l.b16 %v369
      %v385 = vpack.c.b16 %v382, %v381
      %v386 = vpack.c.b16 %v384, %v383
      %vm389 = vcmask 261120
      %v391 = vsel %vm389, %v364, 0
      %v394 = vsel %vm389, %v365, 0
      %396 = vmatprep.subr.bf16.mxu0 0
      %397 = vmatpush1.bf16.msra.mxu0 %v385
      %398 = vmatprep.subr.bf16.mxu0 0
      %399 = vmatpush1.bf16.msra.mxu0 %v386
      %400 = vmatprep.subr.bf16.mxu0 0
      %401 = vmatpush1.bf16.msra.mxu0 0
      %402 = vmatprep.subr.bf16.mxu0 0
      %403 = vmatpush1.bf16.msra.mxu0 0
      %404 = vmatprep.subr.bf16.mxu0 0
      %405 = vmatpush1.bf16.msra.mxu0 0
      %406 = vmatprep.subr.bf16.mxu0 0
      %407 = vmatpush1.bf16.msra.mxu0 0
      %408 = vmatprep.subr.bf16.mxu0 0
      %409 = vmatpush1.bf16.msra.mxu0 0
      %410 = vmatprep.subr.bf16.mxu0 0
      %411 = vmatpush1.bf16.msra.mxu0 0
      %412 = vmatprep.subr.bf16.mxu0 0
      %413 = vmatpush1.bf16.msra.mxu0 0
      %414 = vmatprep.subr.bf16.mxu0 0
      %415 = vmatpush1.bf16.msra.mxu0 0
      %416 = vmatprep.subr.bf16.mxu0 0
      %417 = vmatpush1.bf16.msra.mxu0 0
      %418 = vmatprep.subr.bf16.mxu0 0
      %419 = vmatpush1.bf16.msra.mxu0 0
      %420 = vmatprep.subr.bf16.mxu0 0
      %421 = vmatpush1.bf16.msra.mxu0 0
      %422 = vmatprep.subr.bf16.mxu0 0
      %423 = vmatpush1.bf16.msra.mxu0 0
      %424 = vmatprep.subr.bf16.mxu0 0
      %425 = vmatpush1.bf16.msra.mxu0 0
      %426 = vmatprep.subr.bf16.mxu0 0
      %427 = vmatpush1.bf16.msra.mxu0 0
      %428 = vmatprep.mubr.bf16.mxu0 0
      %429 = vmatmul.mubr.bf16.gmra.mrb[0].mxu0 %v391
      %v430 = vpop.f32.mrb[0].mxu0
      %v431 = vadd.f32 %v375, %v430
      %v432 = vpop.f32.mrb[0].mxu0
      %v433 = vpop.f32.mrb[0].mxu0
      %v434 = vadd.f32 %v375, %v433
      %v435 = vpop.f32.mrb[0].mxu0
      %436 = vmatprep.mubr.bf16.mxu0 0
      %437 = vmatmul.mubr.bf16.gmra.mrb[0].mxu0 %v394
      %v438 = vpop.f32.mrb[0].mxu0
      %v439 = vadd.f32 %v375, %v438
      %v440 = vpop.f32.mrb[0].mxu0
      %v441 = vpop.f32.mrb[0].mxu0
      %v442 = vpop.f32.mrb[0].mxu0
      %443 = vdwg.mxu0
      %v444 = vmul.f32 %v431, 0.5
      %v445 = vmul.f32 %v434, 0.5
      %v446 = vmul.f32 %v439, 0.5
      %v447 = vmul.f32 %v431, 0.70710677
      %v448 = vmul.f32 %v434, 0.70710677
      %v449 = vmul.f32 %v439, 0.70710677
      %v450 = vand.u32 2147483647, %v447
      %v451 = vand.u32 2147483647, %v448
      %v452 = vand.u32 2147483647, %v449
      %v453 = vmul.f32 %v450, 0.3275911
      %v454 = vmul.f32 %v451, 0.3275911
      %v455 = vmul.f32 %v452, 0.3275911
      %v456 = vadd.f32 %v453, 1.0
      %v457 = vadd.f32 %v454, 1.0
      %v458 = vadd.f32 %v455, 1.0
      %v459 = vrcp.pop %v456
      %v460 = vmul.f32 1.0, %v459
      %v461 = vrcp.pop %v457
      %v462 = vmul.f32 1.0, %v461
      %v463 = vrcp.pop %v458
      %v464 = vmul.f32 1.0, %v463
      %v465 = vmul.f32 %v460, 1.0614054
      %v466 = vmul.f32 %v462, 1.0614054
      %v467 = vmul.f32 %v464, 1.0614054
      %v468 = vadd.f32 %v465, -1.4531521
      %v469 = vadd.f32 %v466, -1.4531521
      %v470 = vadd.f32 %v467, -1.4531521
      %v471 = vmul.f32 %v468, %v460
      %v472 = vmul.f32 %v469, %v462
      %v473 = vmul.f32 %v470, %v464
      %v474 = vadd.f32 %v471, 1.4214138
      %v475 = vadd.f32 %v472, 1.4214138
      %v476 = vadd.f32 %v473, 1.4214138
      %v477 = vmul.f32 %v474, %v460
      %v478 = vmul.f32 %v475, %v462
      %v479 = vmul.f32 %v476, %v464
      %v480 = vadd.f32 %v477, -0.28449672
      %v481 = vadd.f32 %v478, -0.28449672
      %v482 = vadd.f32 %v479, -0.28449672
      %v483 = vmul.f32 %v480, %v460
      %v484 = vmul.f32 %v481, %v462
      %v485 = vmul.f32 %v482, %v464
      %v486 = vadd.f32 %v483, 0.2548296
      %v487 = vadd.f32 %v484, 0.2548296
      %v488 = vadd.f32 %v485, 0.2548296
      %v489 = vmul.f32 %v486, %v460
      %v490 = vmul.f32 %v487, %v462
      %v491 = vmul.f32 %v488, %v464
      %v492 = vsub.f32 0.0, %v450
      %v493 = vsub.f32 0.0, %v451
      %v494 = vsub.f32 0.0, %v452
      %v495 = vmul.f32 %v492, %v450
      %v496 = vmul.f32 %v493, %v451
      %v497 = vmul.f32 %v494, %v452
      %v498 = vmul.f32 %v495, 1.442695
      %v499 = vpow.pop %v498
      %v500 = vmul.f32 %v496, 1.442695
      %v501 = vpow.pop %v500
      %v502 = vmul.f32 %v497, 1.442695
      %v503 = vpow.pop %v502
      %v504 = vmul.f32 %v489, %v499
      %v505 = vmul.f32 %v490, %v501
      %v506 = vmul.f32 %v491, %v503
      %v507 = vsub.f32 1.0, %v504
      %v508 = vsub.f32 1.0, %v505
      %v509 = vsub.f32 1.0, %v506
      %vm510 = vcmp.lt.f32.partialorder %v447, 0.0
      %vm511 = vcmp.lt.f32.partialorder %v448, 0.0
      %vm512 = vcmp.lt.f32.partialorder %v449, 0.0
      %v513 = vsub.f32 0.0, %v507
      %v514 = vsub.f32 0.0, %v508
      %v515 = vsub.f32 0.0, %v509
      %v516 = vsel %vm510, %v513, %v507
      %v517 = vsel %vm511, %v514, %v508
      %v518 = vsel %vm512, %v515, %v509
      %v519 = vadd.f32 %v516, 1.0
      %v520 = vadd.f32 %v517, 1.0
      %v521 = vadd.f32 %v518, 1.0
      %v522 = vmul.f32 %v444, %v519
      %v523 = vmul.f32 %v445, %v520
      %v524 = vmul.f32 %v446, %v521
      %v525 = vpack.c.bf16 %v523, %v522
      %v526 = vpack.c.bf16 %v524, %v524
      %v527 = vld [vmem:[%s4] sm:$0xf]
      %v528 = vld [vmem:[%s4 + $0x4] sm:$0xf]
      %v529 = vld [vmem:[%s5] sm:$0x1]
      %v531 = vlaneseq
      %v532 = vshrl.u32 %v531, 7
      %v533 = vsub.s32 0, %v532
      %v534 = vrot.slane %v529, %v533
      %v538 = vunpack.c.l.b16 %v527
      %v539 = vunpack.c.l.b16 %v528
      %v540 = vpack.c.b16 %v539, %v538
      %vm542 = vcmask 130048
      %v544 = vsel %vm542, %v525, 0
      %v547 = vsel %vm542, %v526, 0
      %549 = vmatprep.subr.bf16.mxu0 0
      %550 = vmatpush1.bf16.msra.mxu0 %v540
      %551 = vmatprep.subr.bf16.mxu0 0
      %552 = vmatpush1.bf16.msra.mxu0 0
      %553 = vmatprep.subr.bf16.mxu0 0
      %554 = vmatpush1.bf16.msra.mxu0 0
      %555 = vmatprep.subr.bf16.mxu0 0
      %556 = vmatpush1.bf16.msra.mxu0 0
      %557 = vmatprep.subr.bf16.mxu0 0
      %558 = vmatpush1.bf16.msra.mxu0 0
      %559 = vmatprep.subr.bf16.mxu0 0
      %560 = vmatpush1.bf16.msra.mxu0 0
      %561 = vmatprep.subr.bf16.mxu0 0
      %562 = vmatpush1.bf16.msra.mxu0 0
      %563 = vmatprep.subr.bf16.mxu0 0
      %564 = vmatpush1.bf16.msra.mxu0 0
      %565 = vmatprep.subr.bf16.mxu0 0
      %566 = vmatpush1.bf16.msra.mxu0 0
      %567 = vmatprep.subr.bf16.mxu0 0
      %568 = vmatpush1.bf16.msra.mxu0 0
      %569 = vmatprep.subr.bf16.mxu0 0
      %570 = vmatpush1.bf16.msra.mxu0 0
      %571 = vmatprep.subr.bf16.mxu0 0
      %572 = vmatpush1.bf16.msra.mxu0 0
      %573 = vmatprep.subr.bf16.mxu0 0
      %574 = vmatpush1.bf16.msra.mxu0 0
      %575 = vmatprep.subr.bf16.mxu0 0
      %576 = vmatpush1.bf16.msra.mxu0 0
      %577 = vmatprep.subr.bf16.mxu0 0
      %578 = vmatpush1.bf16.msra.mxu0 0
      %579 = vmatprep.subr.bf16.mxu0 0
      %580 = vmatpush1.bf16.msra.mxu0 0
      %581 = vmatprep.mubr.bf16.mxu0 0
      %582 = vmatmul.mubr.bf16.gmra.mrb[0].mxu0 %v544
      %v583 = vpop.f32.mrb[0].mxu0
      %v584 = vadd.f32 %v534, %v583
      %v585 = vpop.f32.mrb[0].mxu0
      %v586 = vpop.f32.mrb[0].mxu0
      %v587 = vadd.f32 %v534, %v586
      %v588 = vpop.f32.mrb[0].mxu0
      %589 = vmatprep.mubr.bf16.mxu0 0
      %590 = vmatmul.mubr.bf16.gmra.mrb[0].mxu0 %v547
      %v591 = vpop.f32.mrb[0].mxu0
      %v592 = vadd.f32 %v534, %v591
      %v593 = vpop.f32.mrb[0].mxu0
      %v594 = vpop.f32.mrb[0].mxu0
      %v595 = vpop.f32.mrb[0].mxu0
      %596 = vdwg.mxu0
      %v597 = vmax.f32 %v584, 0.0
      %v598 = vmax.f32 %v587, 0.0
      %v599 = vmax.f32 %v592, 0.0
      %v600 = vpack.c.bf16 %v598, %v597
      %v601 = vpack.c.bf16 %v599, %v599
      %v602 = vld [vmem:[%s1] sm:$0xff]
      %v603 = vld [vmem:[%s1 + $0x8] sm:$0xff]
      %v604 = vld [vmem:[%s1 + $0x10] sm:$0x1]
      %v605 = vpack.c.bf16 %v603, %v602
      %v606 = vpack.c.bf16 %v604, %v604
      %v608 = vshrl.u32 %v600, 16
      %v610 = vrot.slane %v608, 5
      %v611 = vshll.u32 %v600, 16
      %v613 = vrot.slane %v611, 6
      %v614 = vor.u32 %v610, %v613
      %615 = vrot.lane.b32.xlu0 %v614, 120
      %v616 = vpop.permute.xlu0 %615
      %617 = vrot.lane.b32.xlu0 %v610, 120
      %v618 = vpop.permute.xlu0 %617
      %vm621 = vcmask 1042432
      %vm622 = vsmask.f32 2304
      %vm623 = vmand %vm621, %vm622
      %v624 = vsel %vm623, 0, %v616
      %626 = vset.pattern.permute.xlu0 0
      %627 = vperm.xlu0 %626, %v605
      %v628 = vpop.permute.xlu0 %627
      %631 = vset.pattern.permute.xlu0 0
      %632 = vperm.xlu0 %631, %v606
      %v633 = vpop.permute.xlu0 %632
      %v635 = vmul.bf16 %v624, %v628
      %v636 = vmul.bf16 %v618, %v633
      %v637 = vld [vmem:[%s6] sm:$0x3]
      %v639 = vrot.slane %v600, 6
      %640 = vrot.lane.b32.xlu0 %v639, 120
      %v641 = vpop.permute.xlu0 %640
      %vm643 = vcmask 1041408
      %v646 = vsel %vm643, 0, %v641
      %648 = vset.pattern.permute.xlu0 1
      %649 = vperm.xlu0 %648, %v605
      %v650 = vpop.permute.xlu0 %649
      %652 = vset.pattern.permute.xlu0 1
      %653 = vperm.xlu0 %652, %v606
      %v654 = vpop.permute.xlu0 %653
      %v656 = vmul.bf16 %v646, %v650
      %v657 = vmul.bf16 %v641, %v654
      %s658 = scalar_lea.vmem %s6, 2
      %v659 = vld [vmem:[%s658] sm:$0x3]
      %vm660 = vcmask 31744
      %v662 = vsel %vm660, %v656, 0
      %v665 = vsel %vm660, %v657, 0
      %v668 = vsel %vm643, %v659, 0
      %670 = vmatprep.subr.bf16.mxu0 0
      %671 = vmatpush1.bf16.msra.mxu0 %v668
      %672 = vmatprep.subr.bf16.mxu0 0
      %673 = vmatpush1.bf16.msra.mxu0 0
      %674 = vmatprep.subr.bf16.mxu0 0
      %675 = vmatpush1.bf16.msra.mxu0 0
      %676 = vmatprep.subr.bf16.mxu0 0
      %677 = vmatpush1.bf16.msra.mxu0 0
      %678 = vmatprep.subr.bf16.mxu0 0
      %679 = vmatpush1.bf16.msra.mxu0 0
      %680 = vmatprep.subr.bf16.mxu0 0
      %681 = vmatpush1.bf16.msra.mxu0 0
      %682 = vmatprep.subr.bf16.mxu0 0
      %683 = vmatpush1.bf16.msra.mxu0 0
      %684 = vmatprep.subr.bf16.mxu0 0
      %685 = vmatpush1.bf16.msra.mxu0 0
      %686 = vmatprep.subr.bf16.mxu0 0
      %687 = vmatpush1.bf16.msra.mxu0 0
      %688 = vmatprep.subr.bf16.mxu0 0
      %689 = vmatpush1.bf16.msra.mxu0 0
      %690 = vmatprep.subr.bf16.mxu0 0
      %691 = vmatpush1.bf16.msra.mxu0 0
      %692 = vmatprep.subr.bf16.mxu0 0
      %693 = vmatpush1.bf16.msra.mxu0 0
      %694 = vmatprep.subr.bf16.mxu0 0
      %695 = vmatpush1.bf16.msra.mxu0 0
      %696 = vmatprep.subr.bf16.mxu0 0
      %697 = vmatpush1.bf16.msra.mxu0 0
      %698 = vmatprep.subr.bf16.mxu0 0
      %699 = vmatpush1.bf16.msra.mxu0 0
      %700 = vmatprep.subr.bf16.mxu0 0
      %701 = vmatpush1.bf16.msra.mxu0 0
      %702 = vmatprep.mubr.bf16.mxu0 0
      %703 = vmatmul.mubr.bf16.gmra.mrb[0].mxu0 %v662
      %v704 = vpop.f32.mrb[0].mxu0
      %v705 = vadd.f32 0.0, %v704
      %v706 = vpop.f32.mrb[0].mxu0
      %v707 = vpop.f32.mrb[0].mxu0
      %v708 = vadd.f32 0.0, %v707
      %v709 = vpop.f32.mrb[0].mxu0
      %710 = vmatprep.mubr.bf16.mxu0 0
      %711 = vmatmul.mubr.bf16.gmra.mrb[0].mxu0 %v665
      %v712 = vpop.f32.mrb[0].mxu0
      %v713 = vadd.f32 0.0, %v712
      %v714 = vpop.f32.mrb[0].mxu0
      %v715 = vpop.f32.mrb[0].mxu0
      %v716 = vpop.f32.mrb[0].mxu0
      %717 = vdwg.mxu0
      %v719 = vsel %vm660, %v635, 0
      %v722 = vsel %vm660, %v636, 0
      %v725 = vsel %vm643, %v637, 0
      %727 = vmatprep.subr.bf16.mxu0 0
      %728 = vmatpush1.bf16.msra.mxu0 %v725
      %729 = vmatprep.subr.bf16.mxu0 0
      %730 = vmatpush1.bf16.msra.mxu0 0
      %731 = vmatprep.subr.bf16.mxu0 0
      %732 = vmatpush1.bf16.msra.mxu0 0
      %733 = vmatprep.subr.bf16.mxu0 0
      %734 = vmatpush1.bf16.msra.mxu0 0
      %735 = vmatprep.subr.bf16.mxu0 0
      %736 = vmatpush1.bf16.msra.mxu0 0
      %737 = vmatprep.subr.bf16.mxu0 0
      %738 = vmatpush1.bf16.msra.mxu0 0
      %739 = vmatprep.subr.bf16.mxu0 0
      %740 = vmatpush1.bf16.msra.mxu0 0
      %741 = vmatprep.subr.bf16.mxu0 0
      %742 = vmatpush1.bf16.msra.mxu0 0
      %743 = vmatprep.subr.bf16.mxu0 0
      %744 = vmatpush1.bf16.msra.mxu0 0
      %745 = vmatprep.subr.bf16.mxu0 0
      %746 = vmatpush1.bf16.msra.mxu0 0
      %747 = vmatprep.subr.bf16.mxu0 0
      %748 = vmatpush1.bf16.msra.mxu0 0
      %749 = vmatprep.subr.bf16.mxu0 0
      %750 = vmatpush1.bf16.msra.mxu0 0
      %751 = vmatprep.subr.bf16.mxu0 0
      %752 = vmatpush1.bf16.msra.mxu0 0
      %753 = vmatprep.subr.bf16.mxu0 0
      %754 = vmatpush1.bf16.msra.mxu0 0
      %755 = vmatprep.subr.bf16.mxu0 0
      %756 = vmatpush1.bf16.msra.mxu0 0
      %757 = vmatprep.subr.bf16.mxu0 0
      %758 = vmatpush1.bf16.msra.mxu0 0
      %759 = vmatprep.mubr.bf16.mxu0 0
      %760 = vmatmul.mubr.bf16.gmra.mrb[0].mxu0 %v719
      %v761 = vpop.f32.mrb[0].mxu0
      %v762 = vadd.f32 %v705, %v761
      %v763 = vpop.f32.mrb[0].mxu0
      %v764 = vpop.f32.mrb[0].mxu0
      %v765 = vadd.f32 %v708, %v764
      %v766 = vpop.f32.mrb[0].mxu0
      %767 = vmatprep.mubr.bf16.mxu0 0
      %768 = vmatmul.mubr.bf16.gmra.mrb[0].mxu0 %v722
      %v769 = vpop.f32.mrb[0].mxu0
      %v770 = vadd.f32 %v713, %v769
      %v771 = vpop.f32.mrb[0].mxu0
      %v772 = vpop.f32.mrb[0].mxu0
      %v773 = vpop.f32.mrb[0].mxu0
      %774 = vdwg.mxu0
      %v775 = vrot.slane %v608, 6
      %v776 = vrot.slane %v611, 7
      %v777 = vor.u32 %v775, %v776
      %778 = vrot.lane.b32.xlu0 %v777, 120
      %v779 = vpop.permute.xlu0 %778
      %780 = vrot.lane.b32.xlu0 %v775, 120
      %v781 = vpop.permute.xlu0 %780
      %vm784 = vcmask 1041408
      %vm785 = vsmask.f32 1280
      %vm786 = vmand %vm784, %vm785
      %v787 = vsel %vm786, 0, %v779
      %788 = vset.pattern.permute.xlu0 2
      %789 = vperm.xlu0 %788, %v605
      %v790 = vpop.permute.xlu0 %789
      %792 = vset.pattern.permute.xlu0 2
      %793 = vperm.xlu0 %792, %v606
      %v794 = vpop.permute.xlu0 %793
      %v796 = vmul.bf16 %v787, %v790
      %v797 = vmul.bf16 %v781, %v794
      %s798 = scalar_lea.vmem %s6, 4
      %v799 = vld [vmem:[%s798] sm:$0x3]
      %v801 = vsel %vm660, %v796, 0
      %v804 = vsel %vm660, %v797, 0
      %v807 = vsel %vm643, %v799, 0
      %809 = vmatprep.subr.bf16.mxu0 0
      %810 = vmatpush1.bf16.msra.mxu0 %v807
      %811 = vmatprep.subr.bf16.mxu0 0
      %812 = vmatpush1.bf16.msra.mxu0 0
      %813 = vmatprep.subr.bf16.mxu0 0
      %814 = vmatpush1.bf16.msra.mxu0 0
      %815 = vmatprep.subr.bf16.mxu0 0
      %816 = vmatpush1.bf16.msra.mxu0 0
      %817 = vmatprep.subr.bf16.mxu0 0
      %818 = vmatpush1.bf16.msra.mxu0 0
      %819 = vmatprep.subr.bf16.mxu0 0
      %820 = vmatpush1.bf16.msra.mxu0 0
      %821 = vmatprep.subr.bf16.mxu0 0
      %822 = vmatpush1.bf16.msra.mxu0 0
      %823 = vmatprep.subr.bf16.mxu0 0
      %824 = vmatpush1.bf16.msra.mxu0 0
      %825 = vmatprep.subr.bf16.mxu0 0
      %826 = vmatpush1.bf16.msra.mxu0 0
      %827 = vmatprep.subr.bf16.mxu0 0
      %828 = vmatpush1.bf16.msra.mxu0 0
      %829 = vmatprep.subr.bf16.mxu0 0
      %830 = vmatpush1.bf16.msra.mxu0 0
      %831 = vmatprep.subr.bf16.mxu0 0
      %832 = vmatpush1.bf16.msra.mxu0 0
      %833 = vmatprep.subr.bf16.mxu0 0
      %834 = vmatpush1.bf16.msra.mxu0 0
      %835 = vmatprep.subr.bf16.mxu0 0
      %836 = vmatpush1.bf16.msra.mxu0 0
      %837 = vmatprep.subr.bf16.mxu0 0
      %838 = vmatpush1.bf16.msra.mxu0 0
      %839 = vmatprep.subr.bf16.mxu0 0
      %840 = vmatpush1.bf16.msra.mxu0 0
      %841 = vmatprep.mubr.bf16.mxu0 0
      %842 = vmatmul.mubr.bf16.gmra.mrb[0].mxu0 %v801
      %v843 = vpop.f32.mrb[0].mxu0
      %v844 = vadd.f32 0.0, %v843
      %v845 = vpop.f32.mrb[0].mxu0
      %v846 = vpop.f32.mrb[0].mxu0
      %v847 = vadd.f32 0.0, %v846
      %v848 = vpop.f32.mrb[0].mxu0
      %849 = vmatprep.mubr.bf16.mxu0 0
      %850 = vmatmul.mubr.bf16.gmra.mrb[0].mxu0 %v804
      %v851 = vpop.f32.mrb[0].mxu0
      %v852 = vadd.f32 0.0, %v851
      %v853 = vpop.f32.mrb[0].mxu0
      %v854 = vpop.f32.mrb[0].mxu0
      %v855 = vpop.f32.mrb[0].mxu0
      %856 = vdwg.mxu0
      %v857 = vadd.f32 %v762, %v844
      %v858 = vadd.f32 %v765, %v847
      %v859 = vadd.f32 %v770, %v852
      %v860 = vrot.slane %v608, 7
      %v861 = vor.u32 %v860, %v611
      %862 = vrot.lane.b32.xlu0 %v861, 120
      %v863 = vpop.permute.xlu0 %862
      %864 = vrot.lane.b32.xlu0 %v860, 120
      %v865 = vpop.permute.xlu0 %864
      %vm868 = vcmask 1040384
      %vm869 = vsmask.f32 256
      %vm870 = vmand %vm868, %vm869
      %v871 = vsel %vm870, 0, %v863
      %872 = vset.pattern.permute.xlu0 3
      %873 = vperm.xlu0 %872, %v605
      %v874 = vpop.permute.xlu0 %873
      %876 = vset.pattern.permute.xlu0 3
      %877 = vperm.xlu0 %876, %v606
      %v878 = vpop.permute.xlu0 %877
      %v880 = vmul.bf16 %v871, %v874
      %v881 = vmul.bf16 %v865, %v878
      %s882 = scalar_lea.vmem %s6, 6
      %v883 = vld [vmem:[%s882] sm:$0x3]
      %v885 = vsel %vm660, %v880, 0
      %v888 = vsel %vm660, %v881, 0
      %v891 = vsel %vm643, %v883, 0
      %893 = vmatprep.subr.bf16.mxu0 0
      %894 = vmatpush1.bf16.msra.mxu0 %v891
      %895 = vmatprep.subr.bf16.mxu0 0
      %896 = vmatpush1.bf16.msra.mxu0 0
      %897 = vmatprep.subr.bf16.mxu0 0
      %898 = vmatpush1.bf16.msra.mxu0 0
      %899 = vmatprep.subr.bf16.mxu0 0
      %900 = vmatpush1.bf16.msra.mxu0 0
      %901 = vmatprep.subr.bf16.mxu0 0
      %902 = vmatpush1.bf16.msra.mxu0 0
      %903 = vmatprep.subr.bf16.mxu0 0
      %904 = vmatpush1.bf16.msra.mxu0 0
      %905 = vmatprep.subr.bf16.mxu0 0
      %906 = vmatpush1.bf16.msra.mxu0 0
      %907 = vmatprep.subr.bf16.mxu0 0
      %908 = vmatpush1.bf16.msra.mxu0 0
      %909 = vmatprep.subr.bf16.mxu0 0
      %910 = vmatpush1.bf16.msra.mxu0 0
      %911 = vmatprep.subr.bf16.mxu0 0
      %912 = vmatpush1.bf16.msra.mxu0 0
      %913 = vmatprep.subr.bf16.mxu0 0
      %914 = vmatpush1.bf16.msra.mxu0 0
      %915 = vmatprep.subr.bf16.mxu0 0
      %916 = vmatpush1.bf16.msra.mxu0 0
      %917 = vmatprep.subr.bf16.mxu0 0
      %918 = vmatpush1.bf16.msra.mxu0 0
      %919 = vmatprep.subr.bf16.mxu0 0
      %920 = vmatpush1.bf16.msra.mxu0 0
      %921 = vmatprep.subr.bf16.mxu0 0
      %922 = vmatpush1.bf16.msra.mxu0 0
      %923 = vmatprep.subr.bf16.mxu0 0
      %924 = vmatpush1.bf16.msra.mxu0 0
      %925 = vmatprep.mubr.bf16.mxu0 0
      %926 = vmatmul.mubr.bf16.gmra.mrb[0].mxu0 %v885
      %v927 = vpop.f32.mrb[0].mxu0
      %v928 = vadd.f32 0.0, %v927
      %v929 = vpop.f32.mrb[0].mxu0
      %v930 = vpop.f32.mrb[0].mxu0
      %v931 = vadd.f32 0.0, %v930
      %v932 = vpop.f32.mrb[0].mxu0
      %933 = vmatprep.mubr.bf16.mxu0 0
      %934 = vmatmul.mubr.bf16.gmra.mrb[0].mxu0 %v888
      %v935 = vpop.f32.mrb[0].mxu0
      %v936 = vadd.f32 0.0, %v935
      %v937 = vpop.f32.mrb[0].mxu0
      %v938 = vpop.f32.mrb[0].mxu0
      %v939 = vpop.f32.mrb[0].mxu0
      %940 = vdwg.mxu0
      %v941 = vadd.f32 %v857, %v928
      %v942 = vadd.f32 %v858, %v931
      %v943 = vadd.f32 %v859, %v936
      %944 = vset.pattern.permute.xlu0 4
      %945 = vperm.xlu0 %944, %v605
      %v946 = vpop.permute.xlu0 %945
      %948 = vset.pattern.permute.xlu0 4
      %949 = vperm.xlu0 %948, %v606
      %v950 = vpop.permute.xlu0 %949
      %v952 = vmul.bf16 %v600, %v946
      %v953 = vmul.bf16 %v601, %v950
      %s954 = scalar_lea.vmem %s6, 8
      %v955 = vld [vmem:[%s954] sm:$0x3]
      %958 = vrot.lane.b32.xlu0 %v952, 120
      %v959 = vpop.permute.xlu0 %958
      %960 = vrot.lane.b32.xlu0 %v953, 120
      %v961 = vpop.permute.xlu0 %960
      %v963 = vsel %vm660, %v959, 0
      %v966 = vsel %vm660, %v961, 0
      %v969 = vsel %vm643, %v955, 0
      %971 = vmatprep.subr.bf16.mxu0 0
      %972 = vmatpush1.bf16.msra.mxu0 %v969
      %973 = vmatprep.subr.bf16.mxu0 0
      %974 = vmatpush1.bf16.msra.mxu0 0
      %975 = vmatprep.subr.bf16.mxu0 0
      %976 = vmatpush1.bf16.msra.mxu0 0
      %977 = vmatprep.subr.bf16.mxu0 0
      %978 = vmatpush1.bf16.msra.mxu0 0
      %979 = vmatprep.subr.bf16.mxu0 0
      %980 = vmatpush1.bf16.msra.mxu0 0
      %981 = vmatprep.subr.bf16.mxu0 0
      %982 = vmatpush1.bf16.msra.mxu0 0
      %983 = vmatprep.subr.bf16.mxu0 0
      %984 = vmatpush1.bf16.msra.mxu0 0
      %985 = vmatprep.subr.bf16.mxu0 0
      %986 = vmatpush1.bf16.msra.mxu0 0
      %987 = vmatprep.subr.bf16.mxu0 0
      %988 = vmatpush1.bf16.msra.mxu0 0
      %989 = vmatprep.subr.bf16.mxu0 0
      %990 = vmatpush1.bf16.msra.mxu0 0
      %991 = vmatprep.subr.bf16.mxu0 0
      %992 = vmatpush1.bf16.msra.mxu0 0
      %993 = vmatprep.subr.bf16.mxu0 0
      %994 = vmatpush1.bf16.msra.mxu0 0
      %995 = vmatprep.subr.bf16.mxu0 0
      %996 = vmatpush1.bf16.msra.mxu0 0
      %997 = vmatprep.subr.bf16.mxu0 0
      %998 = vmatpush1.bf16.msra.mxu0 0
      %999 = vmatprep.subr.bf16.mxu0 0
      %1000 = vmatpush1.bf16.msra.mxu0 0
      %1001 = vmatprep.subr.bf16.mxu0 0
      %1002 = vmatpush1.bf16.msra.mxu0 0
      %1003 = vmatprep.mubr.bf16.mxu0 0
      %1004 = vmatmul.mubr.bf16.gmra.mrb[0].mxu0 %v963
      %v1005 = vpop.f32.mrb[0].mxu0
      %v1006 = vadd.f32 0.0, %v1005
      %v1007 = vpop.f32.mrb[0].mxu0
      %v1008 = vpop.f32.mrb[0].mxu0
      %v1009 = vadd.f32 0.0, %v1008
      %v1010 = vpop.f32.mrb[0].mxu0
      %1011 = vmatprep.mubr.bf16.mxu0 0
      %1012 = vmatmul.mubr.bf16.gmra.mrb[0].mxu0 %v966
      %v1013 = vpop.f32.mrb[0].mxu0
      %v1014 = vadd.f32 0.0, %v1013
      %v1015 = vpop.f32.mrb[0].mxu0
      %v1016 = vpop.f32.mrb[0].mxu0
      %v1017 = vpop.f32.mrb[0].mxu0
      %1018 = vdwg.mxu0
      %v1019 = vadd.f32 %v941, %v1006
      %v1020 = vadd.f32 %v942, %v1009
      %v1021 = vadd.f32 %v943, %v1014
      %vm1022 = vsmask.f32 7424
      %v1023 = vrot.slane %v611, 1
      %v1024 = vor.u32 %v608, %v1023
      %v1026 = vshll.u32 %v601, 16
      %v1028 = vrot.slane %v1026, 1
      %v1029 = vsel %vm1022, %v1024, %v1028
      %1031 = vset.pattern.permute.xlu0 5
      %1032 = vperm.xlu0 %1031, %v605
      %v1033 = vpop.permute.xlu0 %1032
      %1035 = vset.pattern.permute.xlu0 5
      %1036 = vperm.xlu0 %1035, %v606
      %v1037 = vpop.permute.xlu0 %1036
      %v1039 = vmul.bf16 %v1029, %v1033
      %v1040 = vmul.bf16 %v1037, 0
      %s1041 = scalar_lea.vmem %s6, 10
      %v1042 = vld [vmem:[%s1041] sm:$0x3]
      %1045 = vrot.lane.b32.xlu0 %v1039, 120
      %v1046 = vpop.permute.xlu0 %1045
      %1047 = vrot.lane.b32.xlu0 %v1040, 120
      %v1048 = vpop.permute.xlu0 %1047
      %v1050 = vsel %vm660, %v1046, 0
      %v1053 = vsel %vm660, %v1048, 0
      %v1056 = vsel %vm643, %v1042, 0
      %1058 = vmatprep.subr.bf16.mxu0 0
      %1059 = vmatpush1.bf16.msra.mxu0 %v1056
      %1060 = vmatprep.subr.bf16.mxu0 0
      %1061 = vmatpush1.bf16.msra.mxu0 0
      %1062 = vmatprep.subr.bf16.mxu0 0
      %1063 = vmatpush1.bf16.msra.mxu0 0
      %1064 = vmatprep.subr.bf16.mxu0 0
      %1065 = vmatpush1.bf16.msra.mxu0 0
      %1066 = vmatprep.subr.bf16.mxu0 0
      %1067 = vmatpush1.bf16.msra.mxu0 0
      %1068 = vmatprep.subr.bf16.mxu0 0
      %1069 = vmatpush1.bf16.msra.mxu0 0
      %1070 = vmatprep.subr.bf16.mxu0 0
      %1071 = vmatpush1.bf16.msra.mxu0 0
      %1072 = vmatprep.subr.bf16.mxu0 0
      %1073 = vmatpush1.bf16.msra.mxu0 0
      %1074 = vmatprep.subr.bf16.mxu0 0
      %1075 = vmatpush1.bf16.msra.mxu0 0
      %1076 = vmatprep.subr.bf16.mxu0 0
      %1077 = vmatpush1.bf16.msra.mxu0 0
      %1078 = vmatprep.subr.bf16.mxu0 0
      %1079 = vmatpush1.bf16.msra.mxu0 0
      %1080 = vmatprep.subr.bf16.mxu0 0
      %1081 = vmatpush1.bf16.msra.mxu0 0
      %1082 = vmatprep.subr.bf16.mxu0 0
      %1083 = vmatpush1.bf16.msra.mxu0 0
      %1084 = vmatprep.subr.bf16.mxu0 0
      %1085 = vmatpush1.bf16.msra.mxu0 0
      %1086 = vmatprep.subr.bf16.mxu0 0
      %1087 = vmatpush1.bf16.msra.mxu0 0
      %1088 = vmatprep.subr.bf16.mxu0 0
      %1089 = vmatpush1.bf16.msra.mxu0 0
      %1090 = vmatprep.mubr.bf16.mxu0 0
      %1091 = vmatmul.mubr.bf16.gmra.mrb[0].mxu0 %v1050
      %v1092 = vpop.f32.mrb[0].mxu0
      %v1093 = vadd.f32 0.0, %v1092
      %v1094 = vpop.f32.mrb[0].mxu0
      %v1095 = vpop.f32.mrb[0].mxu0
      %v1096 = vadd.f32 0.0, %v1095
      %v1097 = vpop.f32.mrb[0].mxu0
      %1098 = vmatprep.mubr.bf16.mxu0 0
      %1099 = vmatmul.mubr.bf16.gmra.mrb[0].mxu0 %v1053
      %v1100 = vpop.f32.mrb[0].mxu0
      %v1101 = vadd.f32 0.0, %v1100
      %v1102 = vpop.f32.mrb[0].mxu0
      %v1103 = vpop.f32.mrb[0].mxu0
      %v1104 = vpop.f32.mrb[0].mxu0
      %1105 = vdwg.mxu0
      %v1106 = vadd.f32 %v1019, %v1093
      %v1107 = vadd.f32 %v1020, %v1096
      %v1108 = vadd.f32 %v1021, %v1101
      %vm1109 = vsmask.f32 6400
      %v1110 = vrot.slane %v608, 1
      %v1111 = vrot.slane %v611, 2
      %v1112 = vor.u32 %v1110, %v1111
      %v1113 = vrot.slane %v1026, 2
      %v1114 = vsel %vm1109, %v1112, %v1113
      %vm1115 = vcmask 1046528
      %v1117 = vsel %vm1115, %v1114, 0
      %1119 = vset.pattern.permute.xlu0 6
      %1120 = vperm.xlu0 %1119, %v605
      %v1121 = vpop.permute.xlu0 %1120
      %1123 = vset.pattern.permute.xlu0 6
      %1124 = vperm.xlu0 %1123, %v606
      %v1125 = vpop.permute.xlu0 %1124
      %v1127 = vmul.bf16 %v1117, %v1121
      %v1128 = vmul.bf16 %v1125, 0
      %s1129 = scalar_lea.vmem %s6, 12
      %v1130 = vld [vmem:[%s1129] sm:$0x3]
      %1133 = vrot.lane.b32.xlu0 %v1127, 120
      %v1134 = vpop.permute.xlu0 %1133
      %1135 = vrot.lane.b32.xlu0 %v1128, 120
      %v1136 = vpop.permute.xlu0 %1135
      %v1138 = vsel %vm660, %v1134, 0
      %v1141 = vsel %vm660, %v1136, 0
      %v1144 = vsel %vm643, %v1130, 0
      %1146 = vmatprep.subr.bf16.mxu0 0
      %1147 = vmatpush1.bf16.msra.mxu0 %v1144
      %1148 = vmatprep.subr.bf16.mxu0 0
      %1149 = vmatpush1.bf16.msra.mxu0 0
      %1150 = vmatprep.subr.bf16.mxu0 0
      %1151 = vmatpush1.bf16.msra.mxu0 0
      %1152 = vmatprep.subr.bf16.mxu0 0
      %1153 = vmatpush1.bf16.msra.mxu0 0
      %1154 = vmatprep.subr.bf16.mxu0 0
      %1155 = vmatpush1.bf16.msra.mxu0 0
      %1156 = vmatprep.subr.bf16.mxu0 0
      %1157 = vmatpush1.bf16.msra.mxu0 0
      %1158 = vmatprep.subr.bf16.mxu0 0
      %1159 = vmatpush1.bf16.msra.mxu0 0
      %1160 = vmatprep.subr.bf16.mxu0 0
      %1161 = vmatpush1.bf16.msra.mxu0 0
      %1162 = vmatprep.subr.bf16.mxu0 0
      %1163 = vmatpush1.bf16.msra.mxu0 0
      %1164 = vmatprep.subr.bf16.mxu0 0
      %1165 = vmatpush1.bf16.msra.mxu0 0
      %1166 = vmatprep.subr.bf16.mxu0 0
      %1167 = vmatpush1.bf16.msra.mxu0 0
      %1168 = vmatprep.subr.bf16.mxu0 0
      %1169 = vmatpush1.bf16.msra.mxu0 0
      %1170 = vmatprep.subr.bf16.mxu0 0
      %1171 = vmatpush1.bf16.msra.mxu0 0
      %1172 = vmatprep.subr.bf16.mxu0 0
      %1173 = vmatpush1.bf16.msra.mxu0 0
      %1174 = vmatprep.subr.bf16.mxu0 0
      %1175 = vmatpush1.bf16.msra.mxu0 0
      %1176 = vmatprep.subr.bf16.mxu0 0
      %1177 = vmatpush1.bf16.msra.mxu0 0
      %1178 = vmatprep.mubr.bf16.mxu0 0
      %1179 = vmatmul.mubr.bf16.gmra.mrb[0].mxu0 %v1138
      %v1180 = vpop.f32.mrb[0].mxu0
      %v1181 = vadd.f32 0.0, %v1180
      %v1182 = vpop.f32.mrb[0].mxu0
      %v1183 = vpop.f32.mrb[0].mxu0
      %v1184 = vadd.f32 0.0, %v1183
      %v1185 = vpop.f32.mrb[0].mxu0
      %1186 = vmatprep.mubr.bf16.mxu0 0
      %1187 = vmatmul.mubr.bf16.gmra.mrb[0].mxu0 %v1141
      %v1188 = vpop.f32.mrb[0].mxu0
      %v1189 = vadd.f32 0.0, %v1188
      %v1190 = vpop.f32.mrb[0].mxu0
      %v1191 = vpop.f32.mrb[0].mxu0
      %v1192 = vpop.f32.mrb[0].mxu0
      %1193 = vdwg.mxu0
      %v1194 = vadd.f32 %v1106, %v1181
      %v1195 = vadd.f32 %v1107, %v1184
      %v1196 = vadd.f32 %v1108, %v1189
      %vm1198 = vcmask 1045504
      %v1199 = vrot.slane %v600, 2
      %v1200 = vrot.slane %v601, 2
      %v1201 = vsel %vm1198, %v1199, %v1200
      %vm1203 = vcmask 1046528
      %vm1204 = vmand %vm1203, %vm1109
      %v1205 = vsel %vm1204, %v1201, 0
      %1206 = vset.pattern.permute.xlu0 7
      %1207 = vperm.xlu0 %1206, %v605
      %v1208 = vpop.permute.xlu0 %1207
      %1210 = vset.pattern.permute.xlu0 7
      %1211 = vperm.xlu0 %1210, %v606
      %v1212 = vpop.permute.xlu0 %1211
      %v1214 = vmul.bf16 %v1205, %v1208
      %v1215 = vmul.bf16 %v1212, 0
      %s1216 = scalar_lea.vmem %s6, 14
      %v1217 = vld [vmem:[%s1216] sm:$0x3]
      %1220 = vrot.lane.b32.xlu0 %v1214, 120
      %v1221 = vpop.permute.xlu0 %1220
      %1222 = vrot.lane.b32.xlu0 %v1215, 120
      %v1223 = vpop.permute.xlu0 %1222
      %v1225 = vsel %vm660, %v1221, 0
      %v1228 = vsel %vm660, %v1223, 0
      %v1231 = vsel %vm643, %v1217, 0
      %1233 = vmatprep.subr.bf16.mxu0 0
      %1234 = vmatpush1.bf16.msra.mxu0 %v1231
      %1235 = vmatprep.subr.bf16.mxu0 0
      %1236 = vmatpush1.bf16.msra.mxu0 0
      %1237 = vmatprep.subr.bf16.mxu0 0
      %1238 = vmatpush1.bf16.msra.mxu0 0
      %1239 = vmatprep.subr.bf16.mxu0 0
      %1240 = vmatpush1.bf16.msra.mxu0 0
      %1241 = vmatprep.subr.bf16.mxu0 0
      %1242 = vmatpush1.bf16.msra.mxu0 0
      %1243 = vmatprep.subr.bf16.mxu0 0
      %1244 = vmatpush1.bf16.msra.mxu0 0
      %1245 = vmatprep.subr.bf16.mxu0 0
      %1246 = vmatpush1.bf16.msra.mxu0 0
      %1247 = vmatprep.subr.bf16.mxu0 0
      %1248 = vmatpush1.bf16.msra.mxu0 0
      %1249 = vmatprep.subr.bf16.mxu0 0
      %1250 = vmatpush1.bf16.msra.mxu0 0
      %1251 = vmatprep.subr.bf16.mxu0 0
      %1252 = vmatpush1.bf16.msra.mxu0 0
      %1253 = vmatprep.subr.bf16.mxu0 0
      %1254 = vmatpush1.bf16.msra.mxu0 0
      %1255 = vmatprep.subr.bf16.mxu0 0
      %1256 = vmatpush1.bf16.msra.mxu0 0
      %1257 = vmatprep.subr.bf16.mxu0 0
      %1258 = vmatpush1.bf16.msra.mxu0 0
      %1259 = vmatprep.subr.bf16.mxu0 0
      %1260 = vmatpush1.bf16.msra.mxu0 0
      %1261 = vmatprep.subr.bf16.mxu0 0
      %1262 = vmatpush1.bf16.msra.mxu0 0
      %1263 = vmatprep.subr.bf16.mxu0 0
      %1264 = vmatpush1.bf16.msra.mxu0 0
      %1265 = vmatprep.mubr.bf16.mxu0 0
      %1266 = vmatmul.mubr.bf16.gmra.mrb[0].mxu0 %v1225
      %v1267 = vpop.f32.mrb[0].mxu0
      %v1268 = vadd.f32 0.0, %v1267
      %v1269 = vpop.f32.mrb[0].mxu0
      %v1270 = vpop.f32.mrb[0].mxu0
      %v1271 = vadd.f32 0.0, %v1270
      %v1272 = vpop.f32.mrb[0].mxu0
      %1273 = vmatprep.mubr.bf16.mxu0 0
      %1274 = vmatmul.mubr.bf16.gmra.mrb[0].mxu0 %v1228
      %v1275 = vpop.f32.mrb[0].mxu0
      %v1276 = vadd.f32 0.0, %v1275
      %v1277 = vpop.f32.mrb[0].mxu0
      %v1278 = vpop.f32.mrb[0].mxu0
      %v1279 = vpop.f32.mrb[0].mxu0
      %1280 = vdwg.mxu0
      %v1281 = vadd.f32 %v1194, %v1268
      %v1282 = vadd.f32 %v1195, %v1271
      %v1283 = vadd.f32 %v1196, %v1276
      %vm1284 = vsmask.f32 5376
      %v1285 = vrot.slane %v608, 2
      %v1286 = vrot.slane %v611, 3
      %v1287 = vor.u32 %v1285, %v1286
      %v1288 = vrot.slane %v1026, 3
      %v1289 = vsel %vm1284, %v1287, %v1288
      %vm1290 = vcmask 1045504
      %v1292 = vsel %vm1290, %v1289, 0
      %1294 = vset.pattern.permute.xlu0 8
      %1295 = vperm.xlu0 %1294, %v605
      %v1296 = vpop.permute.xlu0 %1295
      %1298 = vset.pattern.permute.xlu0 8
      %1299 = vperm.xlu0 %1298, %v606
      %v1300 = vpop.permute.xlu0 %1299
      %v1302 = vmul.bf16 %v1292, %v1296
      %v1303 = vmul.bf16 %v1300, 0
      %s1304 = scalar_lea.vmem %s6, 16
      %v1305 = vld [vmem:[%s1304] sm:$0x3]
      %1308 = vrot.lane.b32.xlu0 %v1302, 120
      %v1309 = vpop.permute.xlu0 %1308
      %1310 = vrot.lane.b32.xlu0 %v1303, 120
      %v1311 = vpop.permute.xlu0 %1310
      %v1313 = vsel %vm660, %v1309, 0
      %v1316 = vsel %vm660, %v1311, 0
      %v1319 = vsel %vm643, %v1305, 0
      %1321 = vmatprep.subr.bf16.mxu0 0
      %1322 = vmatpush1.bf16.msra.mxu0 %v1319
      %1323 = vmatprep.subr.bf16.mxu0 0
      %1324 = vmatpush1.bf16.msra.mxu0 0
      %1325 = vmatprep.subr.bf16.mxu0 0
      %1326 = vmatpush1.bf16.msra.mxu0 0
      %1327 = vmatprep.subr.bf16.mxu0 0
      %1328 = vmatpush1.bf16.msra.mxu0 0
      %1329 = vmatprep.subr.bf16.mxu0 0
      %1330 = vmatpush1.bf16.msra.mxu0 0
      %1331 = vmatprep.subr.bf16.mxu0 0
      %1332 = vmatpush1.bf16.msra.mxu0 0
      %1333 = vmatprep.subr.bf16.mxu0 0
      %1334 = vmatpush1.bf16.msra.mxu0 0
      %1335 = vmatprep.subr.bf16.mxu0 0
      %1336 = vmatpush1.bf16.msra.mxu0 0
      %1337 = vmatprep.subr.bf16.mxu0 0
      %1338 = vmatpush1.bf16.msra.mxu0 0
      %1339 = vmatprep.subr.bf16.mxu0 0
      %1340 = vmatpush1.bf16.msra.mxu0 0
      %1341 = vmatprep.subr.bf16.mxu0 0
      %1342 = vmatpush1.bf16.msra.mxu0 0
      %1343 = vmatprep.subr.bf16.mxu0 0
      %1344 = vmatpush1.bf16.msra.mxu0 0
      %1345 = vmatprep.subr.bf16.mxu0 0
      %1346 = vmatpush1.bf16.msra.mxu0 0
      %1347 = vmatprep.subr.bf16.mxu0 0
      %1348 = vmatpush1.bf16.msra.mxu0 0
      %1349 = vmatprep.subr.bf16.mxu0 0
      %1350 = vmatpush1.bf16.msra.mxu0 0
      %1351 = vmatprep.subr.bf16.mxu0 0
      %1352 = vmatpush1.bf16.msra.mxu0 0
      %1353 = vmatprep.mubr.bf16.mxu0 0
      %1354 = vmatmul.mubr.bf16.gmra.mrb[0].mxu0 %v1313
      %v1355 = vpop.f32.mrb[0].mxu0
      %v1356 = vadd.f32 0.0, %v1355
      %v1357 = vpop.f32.mrb[0].mxu0
      %v1358 = vpop.f32.mrb[0].mxu0
      %v1359 = vadd.f32 0.0, %v1358
      %v1360 = vpop.f32.mrb[0].mxu0
      %1361 = vmatprep.mubr.bf16.mxu0 0
      %1362 = vmatmul.mubr.bf16.gmra.mrb[0].mxu0 %v1316
      %v1363 = vpop.f32.mrb[0].mxu0
      %v1364 = vadd.f32 0.0, %v1363
      %v1365 = vpop.f32.mrb[0].mxu0
      %v1366 = vpop.f32.mrb[0].mxu0
      %v1367 = vpop.f32.mrb[0].mxu0
      %1368 = vdwg.mxu0
      %v1369 = vadd.f32 %v1281, %v1356
      %v1370 = vadd.f32 %v1282, %v1359
      %v1371 = vadd.f32 %v1283, %v1364
      %v1372 = vld [vmem:[%s7] sm:$0x1]
      %v1374 = vlaneseq
      %v1375 = vshrl.u32 %v1374, 7
      %v1376 = vsub.s32 0, %v1375
      %v1377 = vrot.slane %v1372, %v1376
      %v1379 = vadd.f32 %v1369, %v1377
      %v1380 = vadd.f32 %v1370, %v1377
      %v1381 = vadd.f32 %v1371, %v1377
      %v1382 = vmax.f32 %v1379, 0.0
      %v1383 = vmax.f32 %v1380, 0.0
      %v1384 = vmax.f32 %v1381, 0.0
      %1388 = vrot.lane.b32.xlu0 %v1382, 8
      %v1389 = vpop.permute.xlu0 %1388
      %1390 = vrot.lane.b32.xlu0 %v1383, 8
      %v1391 = vpop.permute.xlu0 %1390
      %1392 = vrot.lane.b32.xlu0 %v1384, 8
      %v1393 = vpop.permute.xlu0 %1392
      %vm1397 = vcmask 64512
      %v1398 = vsel %vm1397, %v597, %v1389
      %v1399 = vsel %vm1397, %v598, %v1391
      %v1400 = vsel %vm1397, %v599, %v1393
      %1402 = vset.pattern.permute.xlu0 9
      %1403 = vperm.xlu0 %1402, %v602
      %v1404 = vpop.permute.xlu0 %1403
      %1407 = vset.pattern.permute.xlu0 9
      %1408 = vperm.xlu0 %1407, %v603
      %v1409 = vpop.permute.xlu0 %1408
      %1412 = vset.pattern.permute.xlu0 9
      %1413 = vperm.xlu0 %1412, %v604
      %v1414 = vpop.permute.xlu0 %1413
      %v1416 = vmul.f32 %v1404, %v522
      %v1417 = vmul.f32 %v1409, %v523
      %v1418 = vmul.f32 %v1414, %v524
      %v1419 = vadd.f32 %v522, %v1416
      %v1420 = vadd.f32 %v523, %v1417
      %v1421 = vadd.f32 %v524, %v1418
      %v1422 = vsub.f32 1.0, %v602
      %v1423 = vsub.f32 1.0, %v603
      %v1424 = vsub.f32 1.0, %v604
      %1426 = vset.pattern.permute.xlu0 9
      %1427 = vperm.xlu0 %1426, %v1422
      %v1428 = vpop.permute.xlu0 %1427
      %1431 = vset.pattern.permute.xlu0 9
      %1432 = vperm.xlu0 %1431, %v1423
      %v1433 = vpop.permute.xlu0 %1432
      %1436 = vset.pattern.permute.xlu0 9
      %1437 = vperm.xlu0 %1436, %v1424
      %v1438 = vpop.permute.xlu0 %1437
      %v1440 = vmul.f32 %v1428, %v1398
      %v1441 = vmul.f32 %v1433, %v1399
      %v1442 = vmul.f32 %v1438, %v1400
      %v1443 = vadd.f32 %v1419, %v1440
      %v1444 = vadd.f32 %v1420, %v1441
      %v1445 = vadd.f32 %v1421, %v1442
      %v1446 = vpack.c.bf16 %v1444, %v1443
      %v1447 = vpack.c.bf16 %v1445, %v1445
      %v1448 = vld [vmem:[%s8] sm:$0xf]
      %v1449 = vld [vmem:[%s8 + $0x4] sm:$0xf]
      %v1450 = vld [vmem:[%s9] sm:$0x1]
      %v1452 = vlaneseq
      %v1453 = vshrl.u32 %v1452, 7
      %v1454 = vsub.s32 0, %v1453
      %v1455 = vrot.slane %v1450, %v1454
      %v1459 = vunpack.c.l.b16 %v1448
      %v1460 = vunpack.c.l.b16 %v1449
      %v1461 = vpack.c.b16 %v1460, %v1459
      %v1464 = vsel %vm542, %v1446, 0
      %v1467 = vsel %vm542, %v1447, 0
      %1469 = vmatprep.subr.bf16.mxu0 0
      %1470 = vmatpush1.bf16.msra.mxu0 %v1461
      %1471 = vmatprep.subr.bf16.mxu0 0
      %1472 = vmatpush1.bf16.msra.mxu0 0
      %1473 = vmatprep.subr.bf16.mxu0 0
      %1474 = vmatpush1.bf16.msra.mxu0 0
      %1475 = vmatprep.subr.bf16.mxu0 0
      %1476 = vmatpush1.bf16.msra.mxu0 0
      %1477 = vmatprep.subr.bf16.mxu0 0
      %1478 = vmatpush1.bf16.msra.mxu0 0
      %1479 = vmatprep.subr.bf16.mxu0 0
      %1480 = vmatpush1.bf16.msra.mxu0 0
      %1481 = vmatprep.subr.bf16.mxu0 0
      %1482 = vmatpush1.bf16.msra.mxu0 0
      %1483 = vmatprep.subr.bf16.mxu0 0
      %1484 = vmatpush1.bf16.msra.mxu0 0
      %1485 = vmatprep.subr.bf16.mxu0 0
      %1486 = vmatpush1.bf16.msra.mxu0 0
      %1487 = vmatprep.subr.bf16.mxu0 0
      %1488 = vmatpush1.bf16.msra.mxu0 0
      %1489 = vmatprep.subr.bf16.mxu0 0
      %1490 = vmatpush1.bf16.msra.mxu0 0
      %1491 = vmatprep.subr.bf16.mxu0 0
      %1492 = vmatpush1.bf16.msra.mxu0 0
      %1493 = vmatprep.subr.bf16.mxu0 0
      %1494 = vmatpush1.bf16.msra.mxu0 0
      %1495 = vmatprep.subr.bf16.mxu0 0
      %1496 = vmatpush1.bf16.msra.mxu0 0
      %1497 = vmatprep.subr.bf16.mxu0 0
      %1498 = vmatpush1.bf16.msra.mxu0 0
      %1499 = vmatprep.subr.bf16.mxu0 0
      %1500 = vmatpush1.bf16.msra.mxu0 0
      %1501 = vmatprep.mubr.bf16.mxu0 0
      %1502 = vmatmul.mubr.bf16.gmra.mrb[0].mxu0 %v1464
      %v1503 = vpop.f32.mrb[0].mxu0
      %v1504 = vadd.f32 %v1455, %v1503
      %v1505 = vpop.f32.mrb[0].mxu0
      %v1506 = vpop.f32.mrb[0].mxu0
      %v1507 = vadd.f32 %v1455, %v1506
      %v1508 = vpop.f32.mrb[0].mxu0
      %1509 = vmatprep.mubr.bf16.mxu0 0
      %1510 = vmatmul.mubr.bf16.gmra.mrb[0].mxu0 %v1467
      %v1511 = vpop.f32.mrb[0].mxu0
      %v1512 = vadd.f32 %v1455, %v1511
      %v1513 = vpop.f32.mrb[0].mxu0
      %v1514 = vpop.f32.mrb[0].mxu0
      %v1515 = vpop.f32.mrb[0].mxu0
      %1516 = vdwg.mxu0
      %1517 = vst.msk [vmem:[%s359] sm:$0xff] %vm389, %v1504
      %1518 = vst.msk [vmem:[%s359 + $0x8] sm:$0xff] %vm389, %v1507
      %vm1519 = vcmask 253952
      %1520 = vst.msk [vmem:[%s359 + $0x10] sm:$0x1] %vm1519, %v1512
      %p1521 = scmp.lt.s32.totalorder %s21, 1
      %s1522 = scalar_select %p1521, %s21, 1
      %s1523 = smul.addr %s1522, 3
      %s1524 = smul.addr %s1523, 8
      %s1525 = scalar_lea.vmem %s10, %s1524
      // Predicated region
      $region61: #{conv_adapter3_forward.1} parent=59 // pred_check
        %p1526 = pneg %p254
      $region62: #{conv_adapter3_forward.1} parent=59 // pred_check_branch
        %1528 = sbr.rel (%p1526) target = $region64
      $region63: #{conv_adapter3_forward.1} parent=59 // pred_region
        _
      $region64: #{conv_adapter3_forward.1} parent=59 // pred_fallthru
        _
    $region60: #{conv_adapter3_forward.1} parent=5 // pred_fallthru
      _
    %p1529 = scmp.le.s32.totalorder 2, %s16
    // Predicated region
    $region65: #{conv_adapter3_forward.1} parent=5 // pred_check
      %p1530 = pneg %p1529
    $region66: #{conv_adapter3_forward.1} parent=5 // pred_check_branch
      %1532 = sbr.rel (%p1530) target = $region68
    $region67: #{conv_adapter3_forward.1} parent=5 // pred_region
      %s1533 = ssub.s32 %s16, 2
      // Predicated region
      $region69: #{conv_adapter3_forward.1} parent=67 // pred_check
        %p1534 = pneg %p260
      $region70: #{conv_adapter3_forward.1} parent=67 // pred_check_branch
        %1536 = sbr.rel (%p1534) target = $region72
      $region71: #{conv_adapter3_forward.1} parent=67 // pred_region
        %p1537 = scmp.lt.s32.totalorder %s22, 1
        %s1538 = scalar_select %p1537, %s22, 1
        %s1539 = smul.addr %s1538, 3
        %s1540 = smul.addr %s1539, 8
        %s1541 = scalar_lea.vmem %s10, %s1540
      $region72: #{conv_adapter3_forward.1} parent=67 // pred_fallthru
        _
    $region68: #{conv_adapter3_forward.1} parent=5 // pred_fallthru
      _
  $region6: #{conv_adapter3_forward.1} parent=0 // loop_footer
    %s20 = sadd.s32 1, %s16
  $region7: #{conv_adapter3_forward.1} parent=0 // loop_footer_branch
    %15 = sbr.rel target = $region3
  $region8: #{conv_adapter3_forward.1} parent=0 // loop_exit
    _

</llo_original>
